<compile_context>
chip_gen: v6e
topology: v6e:2x2x1
jax: 0.10.0
libtpu: 0.0.40
codegen_flags: <defaults>
</compile_context>

<pallas_src>
import functools

import jax
import jax.numpy as jnp
import numpy as np
from jax.experimental import pallas as pl
from jax.experimental.pallas import tpu as pltpu

HIDDEN = 32          # MODEL_LAYERS = (32,)*6
N_EMB_LAYERS = 5     # Linear+ReLU pairs in each MLP's embedder
N_LINEARS = 7        # 5 hidden + embedder-final + last_layer per MLP
LANE = 128           # TPU lane width; output padded to a multiple of this


def _round_up(n, m):
    return ((n + m - 1) // m) * m


# ----------------------------------------------------------------------------- kernel

def agg_exc_kernel(x_ref, agg_in_ref, agg_mid_ref, agg_out_ref,
                   exc_in_ref, exc_mid_ref, exc_out_ref, o_ref):
    """Fused AggExc forward for one batch-row block.

    x_ref:       (blk_b, Dp)          input block, columns zero-padded D -> Dp (mult of 8)
    agg_in_ref:  (Dp+1, D*32)         rows 0..Dp-1: W0 value-row on the block diagonal,
                                      row Dp:      positions @ W0[1:,:] + b0 (flattened)
    agg_mid_ref: (5, D*32+1, D*32)    block-diagonal mid weights + tiled bias row (layers 1..5)
    agg_out_ref: (D*32+1, REPp)       stacked W_last/D (mean over input_dim folded in) + b_last
    exc_in_ref:  (REPp+1, 32)         exchanger layer-0 weight (rows zero-padded) + bias row
    exc_mid_ref: (5, 33, 32)          exchanger mid weights + bias rows (layers 1..5)
    exc_out_ref: (33, OUT_PAD)        exchanger last weight + bias row, zero-padded to 128 lanes
    o_ref:       (blk_b, OUT_PAD)     lane-dense padded output block
    """
    dp = x_ref.shape[1]                 # padded input_dim (contraction of layer 0)
    g32 = agg_in_ref.shape[1]           # D * HIDDEN lanes (all input indices side by side)
    rep_p = agg_out_ref.shape[1]        # padded representation_dim

    # Small slabs loaded whole (a few KiB each); the big mid-weight stacks are indexed
    # per layer from their refs to keep vreg live ranges small at large blk_b.
    agg_in = agg_in_ref[...]
    agg_out = agg_out_ref[...]
    exc_in = exc_in_ref[...]
    exc_out = exc_out_ref[...]

    # Aggregator layer 0 for ALL input indices at once (folded [value, position] concat).
    h = jnp.maximum(
        jnp.dot(x_ref[...], agg_in[:dp, :], preferred_element_type=jnp.float32)
        + agg_in[dp:dp + 1, :], 0.0)                                      # (blk_b, D*32)

    # Aggregator layers 1..5, lane-packed block-diagonal: one matmul per layer serves all d.
    for k in range(N_EMB_LAYERS):
        h = (jnp.dot(h, agg_mid_ref[k, :g32, :], preferred_element_type=jnp.float32)
             + agg_mid_ref[k, g32:g32 + 1, :])
        if k < N_EMB_LAYERS - 1:        # layer 5 (embedder-final) has no ReLU
            h = jnp.maximum(h, 0.0)

    # Mean over input_dim + final aggregator Linear (affine => exact), fused into one matmul.
    agg = (jnp.dot(h, agg_out[:g32, :], preferred_element_type=jnp.float32)
           + agg_out[g32:g32 + 1, :])                                     # (blk_b, REPp)

    # Exchanger MLP.
    g = jnp.maximum(
        jnp.dot(agg, exc_in[:rep_p, :], preferred_element_type=jnp.float32)
        + exc_in[rep_p:rep_p + 1, :], 0.0)
    for k in range(N_EMB_LAYERS):
        g = (jnp.dot(g, exc_mid_ref[k, :HIDDEN, :], preferred_element_type=jnp.float32)
             + exc_mid_ref[k, HIDDEN:HIDDEN + 1, :])
        if k < N_EMB_LAYERS - 1:
            g = jnp.maximum(g, 0.0)

    out = (jnp.dot(g, exc_out[:HIDDEN, :], preferred_element_type=jnp.float32)
           + exc_out[HIDDEN:HIDDEN + 1, :])                               # (blk_b, OUT_PAD)
    o_ref[...] = out.astype(o_ref.dtype)                                  # full-width lane-dense store


# ----------------------------------------------------------------------------- parameters

def _init_linear(key, in_dim, out_dim, bias_scale):
    """Deterministic synthetic init (shapes match torch.nn.Linear; values are synthetic)."""
    w = (jax.random.normal(key, (in_dim, out_dim), jnp.float32)
         / jnp.sqrt(jnp.float32(in_dim)))
    b = jnp.linspace(-bias_scale, bias_scale, out_dim, dtype=jnp.float32).reshape(1, out_dim)
    return w, b


def init_mlp_params(key, input_dim, output_dim):
    """One MLP: Linear(input_dim,32)+ReLU x5, Linear(32,32), Linear(32,output_dim)."""
    dims = [input_dim] + [HIDDEN] * N_EMB_LAYERS + [HIDDEN, output_dim]
    keys = jax.random.split(key, N_LINEARS)
    params = []
    for i in range(N_LINEARS):
        bias_scale = 2.0 if i < N_LINEARS - 1 else 0.2   # linspace(-2,2) / linspace(-0.2,0.2)
        params.append(_init_linear(keys[i], dims[i], dims[i + 1], bias_scale))
    return params


def init_agg_exc(key, input_dim, output_dim, location_dim=4, representation_dim=None):
    if representation_dim is None:
        representation_dim = 2 * (input_dim + location_dim)
    k_pos, k_agg, k_exc = jax.random.split(key, 3)
    # random_ball(input_dim, location_dim, inside=False): unit directions on the sphere
    dirs = jax.random.normal(k_pos, (input_dim, location_dim), jnp.float32)
    positions = dirs / jnp.linalg.norm(dirs, axis=1, keepdims=True)
    agg_params = init_mlp_params(k_agg, 1 + location_dim, representation_dim)
    exc_params = init_mlp_params(k_exc, representation_dim, output_dim)
    return positions, agg_params, exc_params


def pack_agg_exc_params(positions, agg_params, exc_params):
    """Fold all grid-invariant work into 6 resident f32 slabs (weight + bias merged per layer).

    - aggregator layer 0: [value, position] concat folded; positions @ W0[1:] + b0 precomputed
    - aggregator layers 1..5: block-diagonal lane-packed weights (one matmul serves all D)
    - aggregator last layer + mean over input_dim: W_last/D stacked per d-group
    - contraction dims padded to multiples of 8 (zero rows/cols, exact) so in-kernel slices align
    - exchanger last layer zero-padded to a lane-dense multiple of 128 columns
    """
    positions = positions.astype(jnp.float32)
    D = positions.shape[0]
    g32 = D * HIDDEN
    d_pad = _round_up(D, 8)
    eye_d = jnp.eye(D, dtype=jnp.float32)

    # ---- aggregator layer 0
    aw0, ab0 = agg_params[0]                                    # (1+L, 32), (1, 32)
    e_w = jnp.kron(eye_d, aw0[0:1, :])                          # (D, D*32), value-row block diag
    e_w = jnp.pad(e_w, ((0, d_pad - D), (0, 0)))                # zero rows for padded x columns
    p0 = (positions @ aw0[1:, :] + ab0).reshape(1, g32)         # (1, D*32), positions term + b0
    agg_in = jnp.concatenate([e_w, p0], axis=0)                 # (d_pad+1, D*32)

    # ---- aggregator layers 1..5 (block-diagonal) with bias rows
    mids = []
    for k in range(1, 1 + N_EMB_LAYERS):
        w, b = agg_params[k]                                    # (32,32), (1,32)
        mids.append(jnp.concatenate(
            [jnp.kron(eye_d, w), jnp.tile(b, (1, D))], axis=0)) # (D*32+1, D*32)
    agg_mid = jnp.stack(mids, axis=0)                           # (5, D*32+1, D*32)

    # ---- aggregator last layer with the mean over input_dim folded in
    awl, abl = agg_params[N_LINEARS - 1]                        # (32, rep), (1, rep)
    rep = awl.shape[1]
    rep_pad = _round_up(rep, 8)
    rproj = jnp.pad(jnp.tile(awl, (D, 1)) / D, ((0, 0), (0, rep_pad - rep)))   # (D*32, rep_pad)
    abl_p = jnp.pad(abl, ((0, 0), (0, rep_pad - rep)))
    agg_out = jnp.concatenate([rproj, abl_p], axis=0)           # (D*32+1, rep_pad)

    # ---- exchanger
    ew0, eb0 = exc_params[0]                                    # (rep, 32), (1, 32)
    exc_in = jnp.concatenate(
        [jnp.pad(ew0, ((0, rep_pad - rep), (0, 0))), eb0], axis=0)   # (rep_pad+1, 32)
    emids = []
    for k in range(1, 1 + N_EMB_LAYERS):
        w, b = exc_params[k]
        emids.append(jnp.concatenate([w, b], axis=0))           # (33, 32)
    exc_mid = jnp.stack(emids, axis=0)                          # (5, 33, 32)

    ewl, ebl = exc_params[N_LINEARS - 1]                        # (32, out), (1, out)
    out_pad = _round_up(ewl.shape[1], LANE)
    pad = out_pad - ewl.shape[1]
    exc_out = jnp.concatenate(
        [jnp.pad(ewl, ((0, 0), (0, pad))), jnp.pad(ebl, ((0, 0), (0, pad)))],
        axis=0)                                                 # (33, OUT_PAD)

    slabs = (agg_in, agg_mid, agg_out, exc_in, exc_mid, exc_out)
    return tuple(s.astype(jnp.float32) for s in slabs)


# ----------------------------------------------------------------------------- forward

@functools.partial(jax.jit, static_argnames=("output_dim", "block_b"))
def agg_exc_forward(x, packed, output_dim, block_b=1024):
    agg_in, agg_mid, agg_out, exc_in, exc_mid, exc_out = packed
    B, D = x.shape
    d_pad = agg_in.shape[0] - 1
    out_pad = exc_out.shape[1]

    x = x.astype(jnp.float32)
    if d_pad != D:
        x = jnp.pad(x, ((0, 0), (0, d_pad - D)))      # zero cols match zero weight rows (exact)

    # Batch-row block: multiple of 8 sublanes, as large as block_b allows; split into at
    # least 2 grid steps when the batch permits so both v7x TensorCores get work.
    bb = _round_up(min(block_b, B), 8)
    if B >= 16 and (B + bb - 1) // bb < 2:
        bb = _round_up((B + 1) // 2, 8)
    B_pad = _round_up(B, bb)
    if B_pad != B:
        x = jnp.pad(x, ((0, B_pad - B), (0, 0)))
    grid = (B_pad // bb,)

    def const_spec(a):
        nd = a.ndim
        return pl.BlockSpec(a.shape, lambda i, _nd=nd: (0,) * _nd)   # resident across grid steps

    in_specs = [pl.BlockSpec((bb, d_pad), lambda i: (i, 0))] + [const_spec(a) for a in packed]
    out_spec = pl.BlockSpec((bb, out_pad), lambda i: (i, 0))

    out_padded = pl.pallas_call(
        agg_exc_kernel,
        out_shape=jax.ShapeDtypeStruct((B_pad, out_pad), jnp.float32),
        grid=grid,
        in_specs=in_specs,
        out_specs=out_spec,
        compiler_params=pltpu.CompilerParams(
            dimension_semantics=("parallel",),
            vmem_limit_bytes=32 * 1024 * 1024),
    )(x, *packed)

    return out_padded[:B, :output_dim]


# ----------------------------------------------------------------------------- reference

def agg_exc_reference(x, positions, agg_params, exc_params):
    """Pure-JAX reference for validation (mirrors the PyTorch forward)."""
    B, D = x.shape
    L = positions.shape[1]
    pos_b = jnp.broadcast_to(positions[None, :, :], (B, D, L)).reshape(B * D, L)
    px = x.reshape(B * D, 1)
    h = jnp.concatenate([px, pos_b], axis=1)

    def mlp(h, params):
        for i, (w, b) in enumerate(params):
            h = h @ w + b
            if i < N_EMB_LAYERS:
                h = jnp.maximum(h, 0.0)
        return h

    agg = mlp(h, agg_params)
    agg = jnp.mean(agg.reshape(B, D, -1), axis=1)
    return mlp(agg, exc_params)


if __name__ == "__main__":
    key = jax.random.PRNGKey(0)
    k_model, k_x = jax.random.split(key)

    B = 16
    INPUT_DIM = 4
    OUTPUT_DIM = 3
    LOCATION_DIM = 4   # default in AggExc.initialize

    positions, agg_params, exc_params = init_agg_exc(
        k_model, INPUT_DIM, OUTPUT_DIM, location_dim=LOCATION_DIM)
    packed = pack_agg_exc_params(positions, agg_params, exc_params)

    x = jax.random.normal(k_x, (B, INPUT_DIM), jnp.float32)

    out = agg_exc_forward(x, packed, output_dim=OUTPUT_DIM)
    out = jax.block_until_ready(out)

    ref = jax.block_until_ready(agg_exc_reference(x, positions, agg_params, exc_params))
    np.testing.assert_allclose(np.asarray(out), np.asarray(ref), rtol=2e-3, atol=2e-3)

    assert out.shape == (B, OUTPUT_DIM) and out.dtype == jnp.float32
    print("KERNEL_OK")
</pallas_src>

<mosaic_0001>
module attributes {stable_mosaic.version = 11 : i64} {
  func.func @agg_exc_kernel(%arg0: i32, %arg1: memref<8x8xf32, #tpu.memory_space<vmem>>, %arg2: memref<9x128xf32, #tpu.memory_space<vmem>>, %arg3: memref<5x129x128xf32, #tpu.memory_space<vmem>>, %arg4: memref<129x16xf32, #tpu.memory_space<vmem>>, %arg5: memref<17x32xf32, #tpu.memory_space<vmem>>, %arg6: memref<5x33x32xf32, #tpu.memory_space<vmem>>, %arg7: memref<33x128xf32, #tpu.memory_space<vmem>>, %arg8: memref<8x128xf32, #tpu.memory_space<vmem>>) attributes {dimension_semantics = [#tpu.dimension_semantics<parallel>], iteration_bounds = array<i64: 2>, scalar_prefetch = 0 : i64, scratch_operands = 0 : i64, tpu.core_type = #tpu.core_type<tc>, window_params = [{transform_indices = @transform_0, window_bounds = array<i64: 8, 8>}, {pipeline_mode = #tpu.pipeline_mode<synchronous>, transform_indices = @transform_1, window_bounds = array<i64: 9, 128>}, {pipeline_mode = #tpu.pipeline_mode<synchronous>, transform_indices = @transform_2, window_bounds = array<i64: 5, 129, 128>}, {pipeline_mode = #tpu.pipeline_mode<synchronous>, transform_indices = @transform_3, window_bounds = array<i64: 129, 16>}, {pipeline_mode = #tpu.pipeline_mode<synchronous>, transform_indices = @transform_4, window_bounds = array<i64: 17, 32>}, {pipeline_mode = #tpu.pipeline_mode<synchronous>, transform_indices = @transform_5, window_bounds = array<i64: 5, 33, 32>}, {pipeline_mode = #tpu.pipeline_mode<synchronous>, transform_indices = @transform_6, window_bounds = array<i64: 33, 128>}, {transform_indices = @transform_7, window_bounds = array<i64: 8, 128>}]} {
    %c0 = arith.constant 0 : index
    %c0_0 = arith.constant 0 : index
    %0 = vector.load %arg2[%c0, %c0_0] : memref<9x128xf32, #tpu.memory_space<vmem>>, vector<9x128xf32>
    %c0_1 = arith.constant 0 : index
    %c0_2 = arith.constant 0 : index
    %1 = vector.load %arg4[%c0_1, %c0_2] : memref<129x16xf32, #tpu.memory_space<vmem>>, vector<129x16xf32>
    %c0_3 = arith.constant 0 : index
    %c0_4 = arith.constant 0 : index
    %2 = vector.load %arg5[%c0_3, %c0_4] : memref<17x32xf32, #tpu.memory_space<vmem>>, vector<17x32xf32>
    %c0_5 = arith.constant 0 : index
    %c0_6 = arith.constant 0 : index
    %3 = vector.load %arg7[%c0_5, %c0_6] : memref<33x128xf32, #tpu.memory_space<vmem>>, vector<33x128xf32>
    %c0_7 = arith.constant 0 : index
    %c0_8 = arith.constant 0 : index
    %4 = vector.load %arg1[%c0_7, %c0_8] : memref<8x8xf32, #tpu.memory_space<vmem>>, vector<8x8xf32>
    %5 = vector.extract_strided_slice %0 {offsets = [0, 0], sizes = [8, 128], strides = [1, 1]} : vector<9x128xf32> to vector<8x128xf32>
    %cst = arith.constant dense<0.000000e+00> : vector<8x128xf32>
    %6 = tpu.matmul %4, %5, %cst {dimension_numbers = #tpu.dot_dimension_numbers<[1], [0], [0], [1], [0, 0, 1, 1], [], []>} : vector<8x8xf32>, vector<8x128xf32>, vector<8x128xf32> -> vector<8x128xf32>
    %7 = vector.extract_strided_slice %0 {offsets = [8, 0], sizes = [1, 128], strides = [1, 1]} : vector<9x128xf32> to vector<1x128xf32>
    %8 = vector.broadcast %7 : vector<1x128xf32> to vector<8x128xf32>
    %9 = arith.addf %6, %8 : vector<8x128xf32>
    %cst_9 = arith.constant 0.000000e+00 : f32
    %10 = vector.broadcast %cst_9 : f32 to vector<8x128xf32>
    %11 = arith.maximumf %9, %10 : vector<8x128xf32>
    %c0_10 = arith.constant 0 : index
    %c0_11 = arith.constant 0 : index
    %c0_12 = arith.constant 0 : index
    %12 = vector.load %arg3[%c0_10, %c0_11, %c0_12] : memref<5x129x128xf32, #tpu.memory_space<vmem>>, vector<1x128x128xf32>
    %13 = vector.shape_cast %12 : vector<1x128x128xf32> to vector<128x128xf32>
    %cst_13 = arith.constant dense<0.000000e+00> : vector<8x128xf32>
    %14 = tpu.matmul %11, %13, %cst_13 {dimension_numbers = #tpu.dot_dimension_numbers<[1], [0], [0], [1], [0, 0, 1, 1], [], []>} : vector<8x128xf32>, vector<128x128xf32>, vector<8x128xf32> -> vector<8x128xf32>
    %c0_14 = arith.constant 0 : index
    %c128 = arith.constant 128 : index
    %c0_15 = arith.constant 0 : index
    %15 = vector.load %arg3[%c0_14, %c128, %c0_15] : memref<5x129x128xf32, #tpu.memory_space<vmem>>, vector<1x1x128xf32>
    %16 = vector.shape_cast %15 : vector<1x1x128xf32> to vector<1x128xf32>
    %17 = vector.broadcast %16 : vector<1x128xf32> to vector<8x128xf32>
    %18 = arith.addf %14, %17 : vector<8x128xf32>
    %cst_16 = arith.constant 0.000000e+00 : f32
    %19 = vector.broadcast %cst_16 : f32 to vector<8x128xf32>
    %20 = arith.maximumf %18, %19 : vector<8x128xf32>
    %c1 = arith.constant 1 : index
    %c0_17 = arith.constant 0 : index
    %c0_18 = arith.constant 0 : index
    %21 = vector.load %arg3[%c1, %c0_17, %c0_18] : memref<5x129x128xf32, #tpu.memory_space<vmem>>, vector<1x128x128xf32>
    %22 = vector.shape_cast %21 : vector<1x128x128xf32> to vector<128x128xf32>
    %cst_19 = arith.constant dense<0.000000e+00> : vector<8x128xf32>
    %23 = tpu.matmul %20, %22, %cst_19 {dimension_numbers = #tpu.dot_dimension_numbers<[1], [0], [0], [1], [0, 0, 1, 1], [], []>} : vector<8x128xf32>, vector<128x128xf32>, vector<8x128xf32> -> vector<8x128xf32>
    %c1_20 = arith.constant 1 : index
    %c128_21 = arith.constant 128 : index
    %c0_22 = arith.constant 0 : index
    %24 = vector.load %arg3[%c1_20, %c128_21, %c0_22] : memref<5x129x128xf32, #tpu.memory_space<vmem>>, vector<1x1x128xf32>
    %25 = vector.shape_cast %24 : vector<1x1x128xf32> to vector<1x128xf32>
    %26 = vector.broadcast %25 : vector<1x128xf32> to vector<8x128xf32>
    %27 = arith.addf %23, %26 : vector<8x128xf32>
    %cst_23 = arith.constant 0.000000e+00 : f32
    %28 = vector.broadcast %cst_23 : f32 to vector<8x128xf32>
    %29 = arith.maximumf %27, %28 : vector<8x128xf32>
    %c2 = arith.constant 2 : index
    %c0_24 = arith.constant 0 : index
    %c0_25 = arith.constant 0 : index
    %30 = vector.load %arg3[%c2, %c0_24, %c0_25] : memref<5x129x128xf32, #tpu.memory_space<vmem>>, vector<1x128x128xf32>
    %31 = vector.shape_cast %30 : vector<1x128x128xf32> to vector<128x128xf32>
    %cst_26 = arith.constant dense<0.000000e+00> : vector<8x128xf32>
    %32 = tpu.matmul %29, %31, %cst_26 {dimension_numbers = #tpu.dot_dimension_numbers<[1], [0], [0], [1], [0, 0, 1, 1], [], []>} : vector<8x128xf32>, vector<128x128xf32>, vector<8x128xf32> -> vector<8x128xf32>
    %c2_27 = arith.constant 2 : index
    %c128_28 = arith.constant 128 : index
    %c0_29 = arith.constant 0 : index
    %33 = vector.load %arg3[%c2_27, %c128_28, %c0_29] : memref<5x129x128xf32, #tpu.memory_space<vmem>>, vector<1x1x128xf32>
    %34 = vector.shape_cast %33 : vector<1x1x128xf32> to vector<1x128xf32>
    %35 = vector.broadcast %34 : vector<1x128xf32> to vector<8x128xf32>
    %36 = arith.addf %32, %35 : vector<8x128xf32>
    %cst_30 = arith.constant 0.000000e+00 : f32
    %37 = vector.broadcast %cst_30 : f32 to vector<8x128xf32>
    %38 = arith.maximumf %36, %37 : vector<8x128xf32>
    %c3 = arith.constant 3 : index
    %c0_31 = arith.constant 0 : index
    %c0_32 = arith.constant 0 : index
    %39 = vector.load %arg3[%c3, %c0_31, %c0_32] : memref<5x129x128xf32, #tpu.memory_space<vmem>>, vector<1x128x128xf32>
    %40 = vector.shape_cast %39 : vector<1x128x128xf32> to vector<128x128xf32>
    %cst_33 = arith.constant dense<0.000000e+00> : vector<8x128xf32>
    %41 = tpu.matmul %38, %40, %cst_33 {dimension_numbers = #tpu.dot_dimension_numbers<[1], [0], [0], [1], [0, 0, 1, 1], [], []>} : vector<8x128xf32>, vector<128x128xf32>, vector<8x128xf32> -> vector<8x128xf32>
    %c3_34 = arith.constant 3 : index
    %c128_35 = arith.constant 128 : index
    %c0_36 = arith.constant 0 : index
    %42 = vector.load %arg3[%c3_34, %c128_35, %c0_36] : memref<5x129x128xf32, #tpu.memory_space<vmem>>, vector<1x1x128xf32>
    %43 = vector.shape_cast %42 : vector<1x1x128xf32> to vector<1x128xf32>
    %44 = vector.broadcast %43 : vector<1x128xf32> to vector<8x128xf32>
    %45 = arith.addf %41, %44 : vector<8x128xf32>
    %cst_37 = arith.constant 0.000000e+00 : f32
    %46 = vector.broadcast %cst_37 : f32 to vector<8x128xf32>
    %47 = arith.maximumf %45, %46 : vector<8x128xf32>
    %c4 = arith.constant 4 : index
    %c0_38 = arith.constant 0 : index
    %c0_39 = arith.constant 0 : index
    %48 = vector.load %arg3[%c4, %c0_38, %c0_39] : memref<5x129x128xf32, #tpu.memory_space<vmem>>, vector<1x128x128xf32>
    %49 = vector.shape_cast %48 : vector<1x128x128xf32> to vector<128x128xf32>
    %cst_40 = arith.constant dense<0.000000e+00> : vector<8x128xf32>
    %50 = tpu.matmul %47, %49, %cst_40 {dimension_numbers = #tpu.dot_dimension_numbers<[1], [0], [0], [1], [0, 0, 1, 1], [], []>} : vector<8x128xf32>, vector<128x128xf32>, vector<8x128xf32> -> vector<8x128xf32>
    %c4_41 = arith.constant 4 : index
    %c128_42 = arith.constant 128 : index
    %c0_43 = arith.constant 0 : index
    %51 = vector.load %arg3[%c4_41, %c128_42, %c0_43] : memref<5x129x128xf32, #tpu.memory_space<vmem>>, vector<1x1x128xf32>
    %52 = vector.shape_cast %51 : vector<1x1x128xf32> to vector<1x128xf32>
    %53 = vector.broadcast %52 : vector<1x128xf32> to vector<8x128xf32>
    %54 = arith.addf %50, %53 : vector<8x128xf32>
    %55 = vector.extract_strided_slice %1 {offsets = [0, 0], sizes = [128, 16], strides = [1, 1]} : vector<129x16xf32> to vector<128x16xf32>
    %cst_44 = arith.constant dense<0.000000e+00> : vector<8x16xf32>
    %56 = tpu.matmul %54, %55, %cst_44 {dimension_numbers = #tpu.dot_dimension_numbers<[1], [0], [0], [1], [0, 0, 1, 1], [], []>} : vector<8x128xf32>, vector<128x16xf32>, vector<8x16xf32> -> vector<8x16xf32>
    %57 = vector.extract_strided_slice %1 {offsets = [128, 0], sizes = [1, 16], strides = [1, 1]} : vector<129x16xf32> to vector<1x16xf32>
    %58 = vector.broadcast %57 : vector<1x16xf32> to vector<8x16xf32>
    %59 = arith.addf %56, %58 : vector<8x16xf32>
    %60 = vector.extract_strided_slice %2 {offsets = [0, 0], sizes = [16, 32], strides = [1, 1]} : vector<17x32xf32> to vector<16x32xf32>
    %cst_45 = arith.constant dense<0.000000e+00> : vector<8x32xf32>
    %61 = tpu.matmul %59, %60, %cst_45 {dimension_numbers = #tpu.dot_dimension_numbers<[1], [0], [0], [1], [0, 0, 1, 1], [], []>} : vector<8x16xf32>, vector<16x32xf32>, vector<8x32xf32> -> vector<8x32xf32>
    %62 = vector.extract_strided_slice %2 {offsets = [16, 0], sizes = [1, 32], strides = [1, 1]} : vector<17x32xf32> to vector<1x32xf32>
    %63 = vector.broadcast %62 : vector<1x32xf32> to vector<8x32xf32>
    %64 = arith.addf %61, %63 : vector<8x32xf32>
    %cst_46 = arith.constant 0.000000e+00 : f32
    %65 = vector.broadcast %cst_46 : f32 to vector<8x32xf32>
    %66 = arith.maximumf %64, %65 : vector<8x32xf32>
    %c0_47 = arith.constant 0 : index
    %c0_48 = arith.constant 0 : index
    %c0_49 = arith.constant 0 : index
    %67 = vector.load %arg6[%c0_47, %c0_48, %c0_49] : memref<5x33x32xf32, #tpu.memory_space<vmem>>, vector<1x32x32xf32>
    %68 = vector.shape_cast %67 : vector<1x32x32xf32> to vector<32x32xf32>
    %cst_50 = arith.constant dense<0.000000e+00> : vector<8x32xf32>
    %69 = tpu.matmul %66, %68, %cst_50 {dimension_numbers = #tpu.dot_dimension_numbers<[1], [0], [0], [1], [0, 0, 1, 1], [], []>} : vector<8x32xf32>, vector<32x32xf32>, vector<8x32xf32> -> vector<8x32xf32>
    %c0_51 = arith.constant 0 : index
    %c32 = arith.constant 32 : index
    %c0_52 = arith.constant 0 : index
    %70 = vector.load %arg6[%c0_51, %c32, %c0_52] : memref<5x33x32xf32, #tpu.memory_space<vmem>>, vector<1x1x32xf32>
    %71 = vector.shape_cast %70 : vector<1x1x32xf32> to vector<1x32xf32>
    %72 = vector.broadcast %71 : vector<1x32xf32> to vector<8x32xf32>
    %73 = arith.addf %69, %72 : vector<8x32xf32>
    %cst_53 = arith.constant 0.000000e+00 : f32
    %74 = vector.broadcast %cst_53 : f32 to vector<8x32xf32>
    %75 = arith.maximumf %73, %74 : vector<8x32xf32>
    %c1_54 = arith.constant 1 : index
    %c0_55 = arith.constant 0 : index
    %c0_56 = arith.constant 0 : index
    %76 = vector.load %arg6[%c1_54, %c0_55, %c0_56] : memref<5x33x32xf32, #tpu.memory_space<vmem>>, vector<1x32x32xf32>
    %77 = vector.shape_cast %76 : vector<1x32x32xf32> to vector<32x32xf32>
    %cst_57 = arith.constant dense<0.000000e+00> : vector<8x32xf32>
    %78 = tpu.matmul %75, %77, %cst_57 {dimension_numbers = #tpu.dot_dimension_numbers<[1], [0], [0], [1], [0, 0, 1, 1], [], []>} : vector<8x32xf32>, vector<32x32xf32>, vector<8x32xf32> -> vector<8x32xf32>
    %c1_58 = arith.constant 1 : index
    %c32_59 = arith.constant 32 : index
    %c0_60 = arith.constant 0 : index
    %79 = vector.load %arg6[%c1_58, %c32_59, %c0_60] : memref<5x33x32xf32, #tpu.memory_space<vmem>>, vector<1x1x32xf32>
    %80 = vector.shape_cast %79 : vector<1x1x32xf32> to vector<1x32xf32>
    %81 = vector.broadcast %80 : vector<1x32xf32> to vector<8x32xf32>
    %82 = arith.addf %78, %81 : vector<8x32xf32>
    %cst_61 = arith.constant 0.000000e+00 : f32
    %83 = vector.broadcast %cst_61 : f32 to vector<8x32xf32>
    %84 = arith.maximumf %82, %83 : vector<8x32xf32>
    %c2_62 = arith.constant 2 : index
    %c0_63 = arith.constant 0 : index
    %c0_64 = arith.constant 0 : index
    %85 = vector.load %arg6[%c2_62, %c0_63, %c0_64] : memref<5x33x32xf32, #tpu.memory_space<vmem>>, vector<1x32x32xf32>
    %86 = vector.shape_cast %85 : vector<1x32x32xf32> to vector<32x32xf32>
    %cst_65 = arith.constant dense<0.000000e+00> : vector<8x32xf32>
    %87 = tpu.matmul %84, %86, %cst_65 {dimension_numbers = #tpu.dot_dimension_numbers<[1], [0], [0], [1], [0, 0, 1, 1], [], []>} : vector<8x32xf32>, vector<32x32xf32>, vector<8x32xf32> -> vector<8x32xf32>
    %c2_66 = arith.constant 2 : index
    %c32_67 = arith.constant 32 : index
    %c0_68 = arith.constant 0 : index
    %88 = vector.load %arg6[%c2_66, %c32_67, %c0_68] : memref<5x33x32xf32, #tpu.memory_space<vmem>>, vector<1x1x32xf32>
    %89 = vector.shape_cast %88 : vector<1x1x32xf32> to vector<1x32xf32>
    %90 = vector.broadcast %89 : vector<1x32xf32> to vector<8x32xf32>
    %91 = arith.addf %87, %90 : vector<8x32xf32>
    %cst_69 = arith.constant 0.000000e+00 : f32
    %92 = vector.broadcast %cst_69 : f32 to vector<8x32xf32>
    %93 = arith.maximumf %91, %92 : vector<8x32xf32>
    %c3_70 = arith.constant 3 : index
    %c0_71 = arith.constant 0 : index
    %c0_72 = arith.constant 0 : index
    %94 = vector.load %arg6[%c3_70, %c0_71, %c0_72] : memref<5x33x32xf32, #tpu.memory_space<vmem>>, vector<1x32x32xf32>
    %95 = vector.shape_cast %94 : vector<1x32x32xf32> to vector<32x32xf32>
    %cst_73 = arith.constant dense<0.000000e+00> : vector<8x32xf32>
    %96 = tpu.matmul %93, %95, %cst_73 {dimension_numbers = #tpu.dot_dimension_numbers<[1], [0], [0], [1], [0, 0, 1, 1], [], []>} : vector<8x32xf32>, vector<32x32xf32>, vector<8x32xf32> -> vector<8x32xf32>
    %c3_74 = arith.constant 3 : index
    %c32_75 = arith.constant 32 : index
    %c0_76 = arith.constant 0 : index
    %97 = vector.load %arg6[%c3_74, %c32_75, %c0_76] : memref<5x33x32xf32, #tpu.memory_space<vmem>>, vector<1x1x32xf32>
    %98 = vector.shape_cast %97 : vector<1x1x32xf32> to vector<1x32xf32>
    %99 = vector.broadcast %98 : vector<1x32xf32> to vector<8x32xf32>
    %100 = arith.addf %96, %99 : vector<8x32xf32>
    %cst_77 = arith.constant 0.000000e+00 : f32
    %101 = vector.broadcast %cst_77 : f32 to vector<8x32xf32>
    %102 = arith.maximumf %100, %101 : vector<8x32xf32>
    %c4_78 = arith.constant 4 : index
    %c0_79 = arith.constant 0 : index
    %c0_80 = arith.constant 0 : index
    %103 = vector.load %arg6[%c4_78, %c0_79, %c0_80] : memref<5x33x32xf32, #tpu.memory_space<vmem>>, vector<1x32x32xf32>
    %104 = vector.shape_cast %103 : vector<1x32x32xf32> to vector<32x32xf32>
    %cst_81 = arith.constant dense<0.000000e+00> : vector<8x32xf32>
    %105 = tpu.matmul %102, %104, %cst_81 {dimension_numbers = #tpu.dot_dimension_numbers<[1], [0], [0], [1], [0, 0, 1, 1], [], []>} : vector<8x32xf32>, vector<32x32xf32>, vector<8x32xf32> -> vector<8x32xf32>
    %c4_82 = arith.constant 4 : index
    %c32_83 = arith.constant 32 : index
    %c0_84 = arith.constant 0 : index
    %106 = vector.load %arg6[%c4_82, %c32_83, %c0_84] : memref<5x33x32xf32, #tpu.memory_space<vmem>>, vector<1x1x32xf32>
    %107 = vector.shape_cast %106 : vector<1x1x32xf32> to vector<1x32xf32>
    %108 = vector.broadcast %107 : vector<1x32xf32> to vector<8x32xf32>
    %109 = arith.addf %105, %108 : vector<8x32xf32>
    %110 = vector.extract_strided_slice %3 {offsets = [0, 0], sizes = [32, 128], strides = [1, 1]} : vector<33x128xf32> to vector<32x128xf32>
    %cst_85 = arith.constant dense<0.000000e+00> : vector<8x128xf32>
    %111 = tpu.matmul %109, %110, %cst_85 {dimension_numbers = #tpu.dot_dimension_numbers<[1], [0], [0], [1], [0, 0, 1, 1], [], []>} : vector<8x32xf32>, vector<32x128xf32>, vector<8x128xf32> -> vector<8x128xf32>
    %112 = vector.extract_strided_slice %3 {offsets = [32, 0], sizes = [1, 128], strides = [1, 1]} : vector<33x128xf32> to vector<1x128xf32>
    %113 = vector.broadcast %112 : vector<1x128xf32> to vector<8x128xf32>
    %114 = arith.addf %111, %113 : vector<8x128xf32>
    %c0_86 = arith.constant 0 : index
    %c0_87 = arith.constant 0 : index
    %115 = vector.load %arg8[%c0_86, %c0_87] : memref<8x128xf32, #tpu.memory_space<vmem>>, vector<8x128xf32>
    tpu.vector_store %arg8[%c0_86, %c0_87], %114 {strides = array<i32>} : memref<8x128xf32, #tpu.memory_space<vmem>>, vector<8x128xf32>,
    return
  }
  func.func @transform_0(%arg0: i32) -> (i32, i32) {
    %c0_i32 = arith.constant 0 : i32
    %c0_i32_0 = arith.constant 0 : i32
    return %arg0, %c0_i32 : i32, i32
  }
  func.func @transform_1(%arg0: i32) -> (i32, i32) {
    %c0_i32 = arith.constant 0 : i32
    %c0_i32_0 = arith.constant 0 : i32
    %c0_i32_1 = arith.constant 0 : i32
    return %c0_i32, %c0_i32_0 : i32, i32
  }
  func.func @transform_2(%arg0: i32) -> (i32, i32, i32) {
    %c0_i32 = arith.constant 0 : i32
    %c0_i32_0 = arith.constant 0 : i32
    %c0_i32_1 = arith.constant 0 : i32
    %c0_i32_2 = arith.constant 0 : i32
    return %c0_i32, %c0_i32_0, %c0_i32_1 : i32, i32, i32
  }
  func.func @transform_3(%arg0: i32) -> (i32, i32) {
    %c0_i32 = arith.constant 0 : i32
    %c0_i32_0 = arith.constant 0 : i32
    %c0_i32_1 = arith.constant 0 : i32
    return %c0_i32, %c0_i32_0 : i32, i32
  }
  func.func @transform_4(%arg0: i32) -> (i32, i32) {
    %c0_i32 = arith.constant 0 : i32
    %c0_i32_0 = arith.constant 0 : i32
    %c0_i32_1 = arith.constant 0 : i32
    return %c0_i32, %c0_i32_0 : i32, i32
  }
  func.func @transform_5(%arg0: i32) -> (i32, i32, i32) {
    %c0_i32 = arith.constant 0 : i32
    %c0_i32_0 = arith.constant 0 : i32
    %c0_i32_1 = arith.constant 0 : i32
    %c0_i32_2 = arith.constant 0 : i32
    return %c0_i32, %c0_i32_0, %c0_i32_1 : i32, i32, i32
  }
  func.func @transform_6(%arg0: i32) -> (i32, i32) {
    %c0_i32 = arith.constant 0 : i32
    %c0_i32_0 = arith.constant 0 : i32
    %c0_i32_1 = arith.constant 0 : i32
    return %c0_i32, %c0_i32_0 : i32, i32
  }
  func.func @transform_7(%arg0: i32) -> (i32, i32) {
    %c0_i32 = arith.constant 0 : i32
    %c0_i32_0 = arith.constant 0 : i32
    return %arg0, %c0_i32 : i32, i32
  }
}

</mosaic_0001>

<llo_original>
// kernel: agg_exc_forward.1
$region0: #{agg_exc_forward.1}
  #allocation0 [shape = 'u32[]', space=smem, size = 0x4, offset = 0x4, fixed_abs, tag = 'smem constant byte address 0x4 - core index']
  #allocation1 [shape = 'u32[144,128]{1,0:T(1,128)}', space=vmem, size = 0x12000, scoped, tag = 'internal scratch']
  %s0 = inlined_call_operand.vmem [shape: f32[16,8], index: 0, kind: input, shape index: {}]
  %s1 = inlined_call_operand.vmem [shape: f32[9,128], index: 1, kind: input, shape index: {}]
  %s2 = inlined_call_operand.hbm [shape: f32[5,129,128], index: 2, kind: input, shape index: {}]
  %s3 = inlined_call_operand.vmem [shape: f32[129,16], index: 3, kind: input, shape index: {}]
  %s4 = inlined_call_operand.vmem [shape: f32[17,32], index: 4, kind: input, shape index: {}]
  %s5 = inlined_call_operand.vmem [shape: f32[5,33,32], index: 5, kind: input, shape index: {}]
  %s6 = inlined_call_operand.vmem [shape: f32[33,128], index: 6, kind: input, shape index: {}]
  %s7 = inlined_call_operand.vmem [shape: f32[16,128], index: 7, kind: output, shape index: {}]
  %s8 = sld [smem:[#allocation0]]
  $region65: #{agg_exc_forward.1} parent=0
    _
  %s10 = ssub.s32 1, %s8
  %s11 = scalar_select 0, %s10, %s8
  $region1: #{agg_exc_forward.1} parent=0
    #allocation2 [shape = 'u8[348160]{0}', space=vmem, size = 0x55000, scoped, tag = 'input window, operand 2, single buffered']
    #allocation3 [shape = 's32[2]{0}', space=sflag, size = 0x8, scoped, tag = 'scoped memory for agg_exc_forward.1']
    %12 = vsyncpa [#allocation3], 0
    loop: start=0, step=1, limit=4
    $region2: #{agg_exc_forward.1} parent=1 // loop_pre_header
      _
    $region3: #{agg_exc_forward.1} parent=1 // loop_header
      %s14 = sphi 0, %s18
      %p15 = scmp.ge.s32.totalorder %s14, 4
      %s24 = sphi 0, %s26
      %s27 = sphi 0, %s24
      %s28 = sphi 0, %s27
      %s44 = sphi 0, %s28
      %s48 = sphi 0, %s48
      %s50 = sphi 0, %s48
      %s51 = sphi 0, %s50
      %s65 = sphi 0, %s51
      %s69 = sphi 0, %s69
      %s71 = sphi 0, %s69
      %s72 = sphi 0, %s71
      %s86 = sphi 0, %s72
      %s90 = sphi 0, %s90
      %s92 = sphi 0, %s90
      %s93 = sphi 0, %s92
      %s107 = sphi 0, %s93
      %s111 = sphi 0, %s111
      %s113 = sphi 0, %s111
      %s114 = sphi 0, %s113
      %s128 = sphi 0, %s114
      %s132 = sphi 0, %s132
      %s134 = sphi 0, %s132
      %s135 = sphi 0, %s134
      %s149 = sphi 0, %s135
      %s153 = sphi 0, %s153
      %s155 = sphi 0, %s153
      %s156 = sphi 0, %s155
      %s170 = sphi 0, %s156
      %s176 = sphi 0, %s178
      %s179 = sphi 0, %s176
      %s180 = sphi 0, %s179
      %s196 = sphi 0, %s180
    $region4: #{agg_exc_forward.1} parent=1 // loop_header_branch
      %17 = sbr.rel (%p15) target = $region8
    $region5: #{agg_exc_forward.1} parent=1 // loop_body
      %s19 = ssub.s32 %s14, 1
      %s20 = ssub.s32 %s14, 2
      %s21 = sadd.s32 %s14, 1
      %s22 = ssub.s32 %s14, %s21
      %p23 = scmp.eq.s32.totalorder %s22, 0
      %s25 = sadd.s32 %s24, 1
      %s26 = scalar_select %p23, %s24, %s25
      %p29 = pneg %p23
      %p30 = scmp.eq.s32.totalorder %s14, 1
      %p31 = por %p29, %p30
      %p32 = scmp.ne.s32.totalorder %s24, %s27
      %p33 = scmp.eq.s32.totalorder %s14, 0
      %p34 = por %p32, %p33
      %p35 = scmp.ne.s32.totalorder %s24, %s27
      %p36 = scmp.eq.s32.totalorder %s19, 1
      %p37 = por %p35, %p36
      %p38 = scmp.ne.s32.totalorder %s27, %s28
      %p39 = scmp.eq.s32.totalorder %s19, 0
      %p40 = por %p38, %p39
      %p41 = scmp.ne.s32.totalorder %s27, %s28
      %p42 = scmp.eq.s32.totalorder %s20, 1
      %p43 = por %p41, %p42
      %p45 = scmp.ne.s32.totalorder %s28, %s44
      %p46 = scmp.eq.s32.totalorder %s20, 0
      %p47 = por %p45, %p46
      %s49 = sadd.s32 %s48, 1
      %p52 = scmp.eq.s32.totalorder %s14, 1
      %p53 = scmp.ne.s32.totalorder %s48, %s50
      %p54 = scmp.eq.s32.totalorder %s14, 0
      %p55 = por %p53, %p54
      %p56 = scmp.ne.s32.totalorder %s48, %s50
      %p57 = scmp.eq.s32.totalorder %s19, 1
      %p58 = por %p56, %p57
      %p59 = scmp.ne.s32.totalorder %s50, %s51
      %p60 = scmp.eq.s32.totalorder %s19, 0
      %p61 = por %p59, %p60
      %p62 = scmp.ne.s32.totalorder %s50, %s51
      %p63 = scmp.eq.s32.totalorder %s20, 1
      %p64 = por %p62, %p63
      %p66 = scmp.ne.s32.totalorder %s51, %s65
      %p67 = scmp.eq.s32.totalorder %s20, 0
      %p68 = por %p66, %p67
      %s70 = sadd.s32 %s69, 1
      %p73 = scmp.eq.s32.totalorder %s14, 1
      %p74 = scmp.ne.s32.totalorder %s69, %s71
      %p75 = scmp.eq.s32.totalorder %s14, 0
      %p76 = por %p74, %p75
      %p77 = scmp.ne.s32.totalorder %s69, %s71
      %p78 = scmp.eq.s32.totalorder %s19, 1
      %p79 = por %p77, %p78
      %p80 = scmp.ne.s32.totalorder %s71, %s72
      %p81 = scmp.eq.s32.totalorder %s19, 0
      %p82 = por %p80, %p81
      %p83 = scmp.ne.s32.totalorder %s71, %s72
      %p84 = scmp.eq.s32.totalorder %s20, 1
      %p85 = por %p83, %p84
      %p87 = scmp.ne.s32.totalorder %s72, %s86
      %p88 = scmp.eq.s32.totalorder %s20, 0
      %p89 = por %p87, %p88
      %s91 = sadd.s32 %s90, 1
      %p94 = scmp.eq.s32.totalorder %s14, 1
      %p95 = scmp.ne.s32.totalorder %s90, %s92
      %p96 = scmp.eq.s32.totalorder %s14, 0
      %p97 = por %p95, %p96
      %p98 = scmp.ne.s32.totalorder %s90, %s92
      %p99 = scmp.eq.s32.totalorder %s19, 1
      %p100 = por %p98, %p99
      %p101 = scmp.ne.s32.totalorder %s92, %s93
      %p102 = scmp.eq.s32.totalorder %s19, 0
      %p103 = por %p101, %p102
      %p104 = scmp.ne.s32.totalorder %s92, %s93
      %p105 = scmp.eq.s32.totalorder %s20, 1
      %p106 = por %p104, %p105
      %p108 = scmp.ne.s32.totalorder %s93, %s107
      %p109 = scmp.eq.s32.totalorder %s20, 0
      %p110 = por %p108, %p109
      %s112 = sadd.s32 %s111, 1
      %p115 = scmp.eq.s32.totalorder %s14, 1
      %p116 = scmp.ne.s32.totalorder %s111, %s113
      %p117 = scmp.eq.s32.totalorder %s14, 0
      %p118 = por %p116, %p117
      %p119 = scmp.ne.s32.totalorder %s111, %s113
      %p120 = scmp.eq.s32.totalorder %s19, 1
      %p121 = por %p119, %p120
      %p122 = scmp.ne.s32.totalorder %s113, %s114
      %p123 = scmp.eq.s32.totalorder %s19, 0
      %p124 = por %p122, %p123
      %p125 = scmp.ne.s32.totalorder %s113, %s114
      %p126 = scmp.eq.s32.totalorder %s20, 1
      %p127 = por %p125, %p126
      %p129 = scmp.ne.s32.totalorder %s114, %s128
      %p130 = scmp.eq.s32.totalorder %s20, 0
      %p131 = por %p129, %p130
      %s133 = sadd.s32 %s132, 1
      %p136 = scmp.eq.s32.totalorder %s14, 1
      %p137 = scmp.ne.s32.totalorder %s132, %s134
      %p138 = scmp.eq.s32.totalorder %s14, 0
      %p139 = por %p137, %p138
      %p140 = scmp.ne.s32.totalorder %s132, %s134
      %p141 = scmp.eq.s32.totalorder %s19, 1
      %p142 = por %p140, %p141
      %p143 = scmp.ne.s32.totalorder %s134, %s135
      %p144 = scmp.eq.s32.totalorder %s19, 0
      %p145 = por %p143, %p144
      %p146 = scmp.ne.s32.totalorder %s134, %s135
      %p147 = scmp.eq.s32.totalorder %s20, 1
      %p148 = por %p146, %p147
      %p150 = scmp.ne.s32.totalorder %s135, %s149
      %p151 = scmp.eq.s32.totalorder %s20, 0
      %p152 = por %p150, %p151
      %s154 = sadd.s32 %s153, 1
      %p157 = scmp.eq.s32.totalorder %s14, 1
      %p158 = scmp.ne.s32.totalorder %s153, %s155
      %p159 = scmp.eq.s32.totalorder %s14, 0
      %p160 = por %p158, %p159
      %p161 = scmp.ne.s32.totalorder %s153, %s155
      %p162 = scmp.eq.s32.totalorder %s19, 1
      %p163 = por %p161, %p162
      %p164 = scmp.ne.s32.totalorder %s155, %s156
      %p165 = scmp.eq.s32.totalorder %s19, 0
      %p166 = por %p164, %p165
      %p167 = scmp.ne.s32.totalorder %s155, %s156
      %p168 = scmp.eq.s32.totalorder %s20, 1
      %p169 = por %p167, %p168
      %p171 = scmp.ne.s32.totalorder %s156, %s170
      %p172 = scmp.eq.s32.totalorder %s20, 0
      %p173 = por %p171, %p172
      %s174 = ssub.s32 %s14, %s21
      %p175 = scmp.eq.s32.totalorder %s174, 0
      %s177 = sadd.s32 %s176, 1
      %s178 = scalar_select %p175, %s176, %s177
      %p181 = pneg %p175
      %p182 = scmp.eq.s32.totalorder %s14, 1
      %p183 = por %p181, %p182
      %p184 = scmp.ne.s32.totalorder %s176, %s179
      %p185 = scmp.eq.s32.totalorder %s14, 0
      %p186 = por %p184, %p185
      %p187 = scmp.ne.s32.totalorder %s176, %s179
      %p188 = scmp.eq.s32.totalorder %s19, 1
      %p189 = por %p187, %p188
      %p190 = scmp.ne.s32.totalorder %s179, %s180
      %p191 = scmp.eq.s32.totalorder %s19, 0
      %p192 = por %p190, %p191
      %p193 = scmp.ne.s32.totalorder %s179, %s180
      %p194 = scmp.eq.s32.totalorder %s20, 1
      %p195 = por %p193, %p194
      %p197 = scmp.ne.s32.totalorder %s180, %s196
      %p198 = scmp.eq.s32.totalorder %s20, 0
      %p199 = por %p197, %p198
      %p200 = scmp.le.s32.totalorder 1, %s14
      %p201 = scmp.lt.s32.totalorder %s14, 3
      %p202 = pnand %p200, %p201
      %p203 = pneg %p202
      // Predicated region
      $region9: #{agg_exc_forward.1} parent=5 // pred_check
        _
      $region10: #{agg_exc_forward.1} parent=5 // pred_check_branch
        %205 = sbr.rel (%p202) target = $region12
      $region11: #{agg_exc_forward.1} parent=5 // pred_region
        %s206 = ssub.s32 %s14, 1
        // Predicated region
        $region13: #{agg_exc_forward.1} parent=11 // pred_check
          %p207 = pneg %p61
        $region14: #{agg_exc_forward.1} parent=11 // pred_check_branch
          %209 = sbr.rel (%p207) target = $region16
        $region15: #{agg_exc_forward.1} parent=11 // pred_region
          _
        $region16: #{agg_exc_forward.1} parent=11 // pred_fallthru
          _
        // Predicated region
        $region17: #{agg_exc_forward.1} parent=11 // pred_check
          %p210 = pneg %p82
        $region18: #{agg_exc_forward.1} parent=11 // pred_check_branch
          %212 = sbr.rel (%p210) target = $region20
        $region19: #{agg_exc_forward.1} parent=11 // pred_region
          %s214 = ssub.s32 10880, 10880
          %215 = vsyncadd [#allocation3], %s214
          %s216 = sshll.u32 [#allocation2], 4
          %s217 = int_to_ptr.vmem [resolvable:$true] %s216
          %222 = dma.hbm_to_vmem [thread:$0]  %s2, 10880, %s217, [#allocation3], 128, 128, 8
        $region20: #{agg_exc_forward.1} parent=11 // pred_fallthru
          _
        // Predicated region
        $region21: #{agg_exc_forward.1} parent=11 // pred_check
          %p223 = pneg %p103
        $region22: #{agg_exc_forward.1} parent=11 // pred_check_branch
          %225 = sbr.rel (%p223) target = $region24
        $region23: #{agg_exc_forward.1} parent=11 // pred_region
          _
        $region24: #{agg_exc_forward.1} parent=11 // pred_fallthru
          _
        // Predicated region
        $region25: #{agg_exc_forward.1} parent=11 // pred_check
          %p226 = pneg %p124
        $region26: #{agg_exc_forward.1} parent=11 // pred_check_branch
          %228 = sbr.rel (%p226) target = $region28
        $region27: #{agg_exc_forward.1} parent=11 // pred_region
          _
        $region28: #{agg_exc_forward.1} parent=11 // pred_fallthru
          _
        // Predicated region
        $region29: #{agg_exc_forward.1} parent=11 // pred_check
          %p229 = pneg %p145
        $region30: #{agg_exc_forward.1} parent=11 // pred_check_branch
          %231 = sbr.rel (%p229) target = $region32
        $region31: #{agg_exc_forward.1} parent=11 // pred_region
          _
        $region32: #{agg_exc_forward.1} parent=11 // pred_fallthru
          _
        // Predicated region
        $region33: #{agg_exc_forward.1} parent=11 // pred_check
          %p232 = pneg %p166
        $region34: #{agg_exc_forward.1} parent=11 // pred_check_branch
          %234 = sbr.rel (%p232) target = $region36
        $region35: #{agg_exc_forward.1} parent=11 // pred_region
          _
        $region36: #{agg_exc_forward.1} parent=11 // pred_fallthru
          _
      $region12: #{agg_exc_forward.1} parent=5 // pred_fallthru
        _
      %p235 = scmp.lt.s32.totalorder %s14, 2
      // Predicated region
      $region37: #{agg_exc_forward.1} parent=5 // pred_check
        %p236 = pneg %p235
      $region38: #{agg_exc_forward.1} parent=5 // pred_check_branch
        %238 = sbr.rel (%p236) target = $region40
      $region39: #{agg_exc_forward.1} parent=5 // pred_region
        // Predicated region
        $region41: #{agg_exc_forward.1} parent=39 // pred_check
          %p239 = pneg %p34
        $region42: #{agg_exc_forward.1} parent=39 // pred_check_branch
          %241 = sbr.rel (%p239) target = $region44
        $region43: #{agg_exc_forward.1} parent=39 // pred_region
          %p242 = scmp.lt.s32.totalorder %s14, 1
          %s243 = scalar_select %p242, %s14, 1
          %s244 = smul.addr %s243, 8
          %s245 = scalar_lea.vmem %s0, %s244
        $region44: #{agg_exc_forward.1} parent=39 // pred_fallthru
          _
      $region40: #{agg_exc_forward.1} parent=5 // pred_fallthru
        _
      %p246 = scmp.le.s32.totalorder 1, %s14
      %p247 = scmp.lt.s32.totalorder %s14, 3
      %p248 = pnand %p246, %p247
      %p249 = pneg %p248
      // Predicated region
      $region45: #{agg_exc_forward.1} parent=5 // pred_check
        _
      $region46: #{agg_exc_forward.1} parent=5 // pred_check_branch
        %251 = sbr.rel (%p248) target = $region48
      $region47: #{agg_exc_forward.1} parent=5 // pred_region
        %s252 = ssub.s32 %s14, 1
        // Predicated region
        $region49: #{agg_exc_forward.1} parent=47 // pred_check
          %p253 = pneg %p82
        $region50: #{agg_exc_forward.1} parent=47 // pred_check_branch
          %255 = sbr.rel (%p253) target = $region52
        $region51: #{agg_exc_forward.1} parent=47 // pred_region
          %256 = dma.done [#allocation3], 10880
        $region52: #{agg_exc_forward.1} parent=47 // pred_fallthru
          _
        %p257 = scmp.lt.s32.totalorder %s19, 1
        %s258 = scalar_select %p257, %s19, 1
        %s259 = smul.addr %s258, 8
        %s260 = scalar_lea.vmem %s0, %s259
        %p261 = pneg %p40
        %p262 = pneg %p37
        %p263 = pneg %p61
        %p264 = pneg %p58
        %p265 = pneg %p82
        %p266 = pneg %p79
        %p267 = pneg %p103
        %p268 = pneg %p100
        %p269 = pneg %p124
        %p270 = pneg %p121
        %p271 = pneg %p145
        %p272 = pneg %p142
        %p273 = pneg %p166
        %p274 = pneg %p163
        %p275 = pneg %p192
        %p276 = pneg %p189
        %p277 = scmp.lt.s32.totalorder %s19, 1
        %s278 = scalar_select %p277, %s19, 1
        %s279 = smul.addr %s278, 8
        %s280 = scalar_lea.vmem %s7, %s279
        %p281 = scmp.lt.s32.totalorder %s19, 1
        %s282 = scalar_select %p281, %s19, 1
        %s283 = smul.addr %s282, 8
        %s284 = scalar_lea.vmem %s0, %s283
        %p285 = scmp.lt.s32.totalorder %s19, 1
        %s286 = scalar_select %p285, %s19, 1
        %s287 = smul.addr %s286, 8
        %s288 = scalar_lea.vmem %s7, %s287
        %v289 = vld [vmem:[%s1] sm:$0xff]
        %v290 = vld [vmem:[%s1 + $0x8] sm:$0x1]
        %v291 = vld [vmem:[%s3] sm:$0xff]
        %v292 = vld [vmem:[%s3 + $0x8] sm:$0xff]
        %v293 = vld [vmem:[%s3 + $0x10] sm:$0xff]
        %v294 = vld [vmem:[%s3 + $0x18] sm:$0xff]
        %v295 = vld [vmem:[%s3 + $0x20] sm:$0xff]
        %v296 = vld [vmem:[%s3 + $0x28] sm:$0xff]
        %v297 = vld [vmem:[%s3 + $0x30] sm:$0xff]
        %v298 = vld [vmem:[%s3 + $0x38] sm:$0xff]
        %v299 = vld [vmem:[%s3 + $0x40] sm:$0xff]
        %v300 = vld [vmem:[%s3 + $0x48] sm:$0xff]
        %v301 = vld [vmem:[%s3 + $0x50] sm:$0xff]
        %v302 = vld [vmem:[%s3 + $0x58] sm:$0xff]
        %v303 = vld [vmem:[%s3 + $0x60] sm:$0xff]
        %v304 = vld [vmem:[%s3 + $0x68] sm:$0xff]
        %v305 = vld [vmem:[%s3 + $0x70] sm:$0xff]
        %v306 = vld [vmem:[%s3 + $0x78] sm:$0xff]
        %v307 = vld [vmem:[%s3 + $0x80] sm:$0x1]
        %v308 = vld [vmem:[%s4] sm:$0xff]
        %v309 = vld [vmem:[%s4 + $0x8] sm:$0xff]
        %v310 = vld [vmem:[%s4 + $0x10] sm:$0x1]
        %v311 = vld [vmem:[%s6] sm:$0xff]
        %v312 = vld [vmem:[%s6 + $0x8] sm:$0xff]
        %v313 = vld [vmem:[%s6 + $0x10] sm:$0xff]
        %v314 = vld [vmem:[%s6 + $0x18] sm:$0xff]
        %v315 = vld [vmem:[%s6 + $0x20] sm:$0x1]
        %v316 = vld [vmem:[%s284] sm:$0xff]
        %v317 = vlaneseq
        %v318 = vshrl.u32 %v317, 7
        %v319 = vsub.s32 0, %v318
        %v320 = vrot.slane %v290, %v319
        %vm321 = vcmask 64512
        %v323 = vsel %vm321, %v316, 0
        %325 = vmatprep.subr.mxu0 0.0
        %326 = vmatpush1.msra.mxu0 0.0
        %327 = vmatprep.subr.mxu0 0.0
        %328 = vmatpush1.msra.mxu0 0.0
        %329 = vmatprep.subr.mxu0 0.0
        %330 = vmatpush1.msra.mxu0 0.0
        %331 = vmatprep.subr.mxu0 0.0
        %332 = vmatpush1.msra.mxu0 0.0
        %333 = vmatprep.subr.mxu0 0.0
        %334 = vmatpush1.msra.mxu0 0.0
        %335 = vmatprep.subr.mxu0 0.0
        %336 = vmatpush1.msra.mxu0 0.0
        %337 = vmatprep.subr.mxu0 0.0
        %338 = vmatpush1.msra.mxu0 0.0
        %339 = vmatprep.subr.mxu0 0.0
        %340 = vmatpush1.msra.mxu0 0.0
        %341 = vmatprep.subr.mxu0 0.0
        %342 = vmatpush1.msra.mxu0 0.0
        %343 = vmatprep.subr.mxu0 0.0
        %344 = vmatpush1.msra.mxu0 0.0
        %345 = vmatprep.subr.mxu0 0.0
        %346 = vmatpush1.msra.mxu0 0.0
        %347 = vmatprep.subr.mxu0 0.0
        %348 = vmatpush1.msra.mxu0 0.0
        %349 = vmatprep.subr.mxu0 0.0
        %350 = vmatpush1.msra.mxu0 0.0
        %351 = vmatprep.subr.mxu0 0.0
        %352 = vmatpush1.msra.mxu0 0.0
        %353 = vmatprep.subr.mxu0 0.0
        %354 = vmatpush1.msra.mxu0 0.0
        %355 = vmatprep.subr.mxu0 0.0
        %356 = vmatpush1.msra.mxu0 %v289
        %357 = vmatprep.subr.mxu0 0.0
        %358 = vmatpush2.msra.mxu0 0.0
        %359 = vmatprep.subr.mxu0 0.0
        %360 = vmatpush2.msra.mxu0 0.0
        %361 = vmatprep.subr.mxu0 0.0
        %362 = vmatpush2.msra.mxu0 0.0
        %363 = vmatprep.subr.mxu0 0.0
        %364 = vmatpush2.msra.mxu0 0.0
        %365 = vmatprep.subr.mxu0 0.0
        %366 = vmatpush2.msra.mxu0 0.0
        %367 = vmatprep.subr.mxu0 0.0
        %368 = vmatpush2.msra.mxu0 0.0
        %369 = vmatprep.subr.mxu0 0.0
        %370 = vmatpush2.msra.mxu0 0.0
        %371 = vmatprep.subr.mxu0 0.0
        %372 = vmatpush2.msra.mxu0 0.0
        %373 = vmatprep.subr.mxu0 0.0
        %374 = vmatpush2.msra.mxu0 0.0
        %375 = vmatprep.subr.mxu0 0.0
        %376 = vmatpush2.msra.mxu0 0.0
        %377 = vmatprep.subr.mxu0 0.0
        %378 = vmatpush2.msra.mxu0 0.0
        %379 = vmatprep.subr.mxu0 0.0
        %380 = vmatpush2.msra.mxu0 0.0
        %381 = vmatprep.subr.mxu0 0.0
        %382 = vmatpush2.msra.mxu0 0.0
        %383 = vmatprep.subr.mxu0 0.0
        %384 = vmatpush2.msra.mxu0 0.0
        %385 = vmatprep.subr.mxu0 0.0
        %386 = vmatpush2.msra.mxu0 0.0
        %387 = vmatprep.subr.mxu0 0.0
        %388 = vmatpush2.msra.mxu0 0.0
        %389 = vmatprep.mubr.f32.mxu0 0.0
        %390 = vmatmul.mubr.f32.gmra.mxu0 %v323
        %v391 = vpop.f32.mrf.mxu0
        %v392 = vadd.f32 %v320, %v391
        %v393 = vpop.f32.mrf.mxu0
        %394 = vdwg.mxu0
        %v395 = vmax.f32 %v392, 0.0
        %v396 = vld [vmem:[#allocation2] sm:$0xff]
        %v397 = vld [vmem:[#allocation2 + $0x8] sm:$0xff]
        %v398 = vld [vmem:[#allocation2 + $0x10] sm:$0xff]
        %v399 = vld [vmem:[#allocation2 + $0x18] sm:$0xff]
        %v400 = vld [vmem:[#allocation2 + $0x20] sm:$0xff]
        %v401 = vld [vmem:[#allocation2 + $0x28] sm:$0xff]
        %v402 = vld [vmem:[#allocation2 + $0x30] sm:$0xff]
        %v403 = vld [vmem:[#allocation2 + $0x38] sm:$0xff]
        %v404 = vld [vmem:[#allocation2 + $0x40] sm:$0xff]
        %v405 = vld [vmem:[#allocation2 + $0x48] sm:$0xff]
        %v406 = vld [vmem:[#allocation2 + $0x50] sm:$0xff]
        %v407 = vld [vmem:[#allocation2 + $0x58] sm:$0xff]
        %v408 = vld [vmem:[#allocation2 + $0x60] sm:$0xff]
        %v409 = vld [vmem:[#allocation2 + $0x68] sm:$0xff]
        %v410 = vld [vmem:[#allocation2 + $0x70] sm:$0xff]
        %v411 = vld [vmem:[#allocation2 + $0x78] sm:$0xff]
        %v412 = vld [vmem:[#allocation2 + $0x80] sm:$0x1]
        %v413 = vlaneseq
        %v414 = vshrl.u32 %v413, 7
        %v415 = vsub.s32 0, %v414
        %v416 = vrot.slane %v412, %v415
        %417 = vmatprep.subr.mxu0 0.0
        %418 = vmatpush1.msra.mxu0 %v411
        %419 = vmatprep.subr.mxu0 0.0
        %420 = vmatpush1.msra.mxu0 %v410
        %421 = vmatprep.subr.mxu0 0.0
        %422 = vmatpush1.msra.mxu0 %v409
        %423 = vmatprep.subr.mxu0 0.0
        %424 = vmatpush1.msra.mxu0 %v408
        %425 = vmatprep.subr.mxu0 0.0
        %426 = vmatpush1.msra.mxu0 %v407
        %427 = vmatprep.subr.mxu0 0.0
        %428 = vmatpush1.msra.mxu0 %v406
        %429 = vmatprep.subr.mxu0 0.0
        %430 = vmatpush1.msra.mxu0 %v405
        %431 = vmatprep.subr.mxu0 0.0
        %432 = vmatpush1.msra.mxu0 %v404
        %433 = vmatprep.subr.mxu0 0.0
        %434 = vmatpush1.msra.mxu0 %v403
        %435 = vmatprep.subr.mxu0 0.0
        %436 = vmatpush1.msra.mxu0 %v402
        %437 = vmatprep.subr.mxu0 0.0
        %438 = vmatpush1.msra.mxu0 %v401
        %439 = vmatprep.subr.mxu0 0.0
        %440 = vmatpush1.msra.mxu0 %v400
        %441 = vmatprep.subr.mxu0 0.0
        %442 = vmatpush1.msra.mxu0 %v399
        %443 = vmatprep.subr.mxu0 0.0
        %444 = vmatpush1.msra.mxu0 %v398
        %445 = vmatprep.subr.mxu0 0.0
        %446 = vmatpush1.msra.mxu0 %v397
        %447 = vmatprep.subr.mxu0 0.0
        %448 = vmatpush1.msra.mxu0 %v396
        %449 = vmatprep.subr.mxu0 0.0
        %450 = vmatpush2.msra.mxu0 0.0
        %451 = vmatprep.subr.mxu0 0.0
        %452 = vmatpush2.msra.mxu0 0.0
        %453 = vmatprep.subr.mxu0 0.0
        %454 = vmatpush2.msra.mxu0 0.0
        %455 = vmatprep.subr.mxu0 0.0
        %456 = vmatpush2.msra.mxu0 0.0
        %457 = vmatprep.subr.mxu0 0.0
        %458 = vmatpush2.msra.mxu0 0.0
        %459 = vmatprep.subr.mxu0 0.0
        %460 = vmatpush2.msra.mxu0 0.0
        %461 = vmatprep.subr.mxu0 0.0
        %462 = vmatpush2.msra.mxu0 0.0
        %463 = vmatprep.subr.mxu0 0.0
        %464 = vmatpush2.msra.mxu0 0.0
        %465 = vmatprep.subr.mxu0 0.0
        %466 = vmatpush2.msra.mxu0 0.0
        %467 = vmatprep.subr.mxu0 0.0
        %468 = vmatpush2.msra.mxu0 0.0
        %469 = vmatprep.subr.mxu0 0.0
        %470 = vmatpush2.msra.mxu0 0.0
        %471 = vmatprep.subr.mxu0 0.0
        %472 = vmatpush2.msra.mxu0 0.0
        %473 = vmatprep.subr.mxu0 0.0
        %474 = vmatpush2.msra.mxu0 0.0
        %475 = vmatprep.subr.mxu0 0.0
        %476 = vmatpush2.msra.mxu0 0.0
        %477 = vmatprep.subr.mxu0 0.0
        %478 = vmatpush2.msra.mxu0 0.0
        %479 = vmatprep.subr.mxu0 0.0
        %480 = vmatpush2.msra.mxu0 0.0
        %481 = vmatprep.mubr.f32.mxu0 0.0
        %482 = vmatmul.mubr.f32.gmra.mxu0 %v395
        %v483 = vpop.f32.mrf.mxu0
        %v484 = vadd.f32 %v416, %v483
        %v485 = vpop.f32.mrf.mxu0
        %486 = vdwg.mxu0
        %v487 = vmax.f32 %v484, 0.0
        %s488 = scalar_lea.vmem [#allocation2], 136
        %v489 = vld [vmem:[%s488] sm:$0xff]
        %v490 = vld [vmem:[%s488 + $0x8] sm:$0xff]
        %v491 = vld [vmem:[%s488 + $0x10] sm:$0xff]
        %v492 = vld [vmem:[%s488 + $0x18] sm:$0xff]
        %v493 = vld [vmem:[%s488 + $0x20] sm:$0xff]
        %v494 = vld [vmem:[%s488 + $0x28] sm:$0xff]
        %v495 = vld [vmem:[%s488 + $0x30] sm:$0xff]
        %v496 = vld [vmem:[%s488 + $0x38] sm:$0xff]
        %v497 = vld [vmem:[%s488 + $0x40] sm:$0xff]
        %v498 = vld [vmem:[%s488 + $0x48] sm:$0xff]
        %v499 = vld [vmem:[%s488 + $0x50] sm:$0xff]
        %v500 = vld [vmem:[%s488 + $0x58] sm:$0xff]
        %v501 = vld [vmem:[%s488 + $0x60] sm:$0xff]
        %v502 = vld [vmem:[%s488 + $0x68] sm:$0xff]
        %v503 = vld [vmem:[%s488 + $0x70] sm:$0xff]
        %v504 = vld [vmem:[%s488 + $0x78] sm:$0xff]
        %v505 = vld [vmem:[%s488 + $0x80] sm:$0x1]
        %v506 = vlaneseq
        %v507 = vshrl.u32 %v506, 7
        %v508 = vsub.s32 0, %v507
        %v509 = vrot.slane %v505, %v508
        %510 = vmatprep.subr.mxu0 0.0
        %511 = vmatpush1.msra.mxu0 %v504
        %512 = vmatprep.subr.mxu0 0.0
        %513 = vmatpush1.msra.mxu0 %v503
        %514 = vmatprep.subr.mxu0 0.0
        %515 = vmatpush1.msra.mxu0 %v502
        %516 = vmatprep.subr.mxu0 0.0
        %517 = vmatpush1.msra.mxu0 %v501
        %518 = vmatprep.subr.mxu0 0.0
        %519 = vmatpush1.msra.mxu0 %v500
        %520 = vmatprep.subr.mxu0 0.0
        %521 = vmatpush1.msra.mxu0 %v499
        %522 = vmatprep.subr.mxu0 0.0
        %523 = vmatpush1.msra.mxu0 %v498
        %524 = vmatprep.subr.mxu0 0.0
        %525 = vmatpush1.msra.mxu0 %v497
        %526 = vmatprep.subr.mxu0 0.0
        %527 = vmatpush1.msra.mxu0 %v496
        %528 = vmatprep.subr.mxu0 0.0
        %529 = vmatpush1.msra.mxu0 %v495
        %530 = vmatprep.subr.mxu0 0.0
        %531 = vmatpush1.msra.mxu0 %v494
        %532 = vmatprep.subr.mxu0 0.0
        %533 = vmatpush1.msra.mxu0 %v493
        %534 = vmatprep.subr.mxu0 0.0
        %535 = vmatpush1.msra.mxu0 %v492
        %536 = vmatprep.subr.mxu0 0.0
        %537 = vmatpush1.msra.mxu0 %v491
        %538 = vmatprep.subr.mxu0 0.0
        %539 = vmatpush1.msra.mxu0 %v490
        %540 = vmatprep.subr.mxu0 0.0
        %541 = vmatpush1.msra.mxu0 %v489
        %542 = vmatprep.subr.mxu0 0.0
        %543 = vmatpush2.msra.mxu0 0.0
        %544 = vmatprep.subr.mxu0 0.0
        %545 = vmatpush2.msra.mxu0 0.0
        %546 = vmatprep.subr.mxu0 0.0
        %547 = vmatpush2.msra.mxu0 0.0
        %548 = vmatprep.subr.mxu0 0.0
        %549 = vmatpush2.msra.mxu0 0.0
        %550 = vmatprep.subr.mxu0 0.0
        %551 = vmatpush2.msra.mxu0 0.0
        %552 = vmatprep.subr.mxu0 0.0
        %553 = vmatpush2.msra.mxu0 0.0
        %554 = vmatprep.subr.mxu0 0.0
        %555 = vmatpush2.msra.mxu0 0.0
        %556 = vmatprep.subr.mxu0 0.0
        %557 = vmatpush2.msra.mxu0 0.0
        %558 = vmatprep.subr.mxu0 0.0
        %559 = vmatpush2.msra.mxu0 0.0
        %560 = vmatprep.subr.mxu0 0.0
        %561 = vmatpush2.msra.mxu0 0.0
        %562 = vmatprep.subr.mxu0 0.0
        %563 = vmatpush2.msra.mxu0 0.0
        %564 = vmatprep.subr.mxu0 0.0
        %565 = vmatpush2.msra.mxu0 0.0
        %566 = vmatprep.subr.mxu0 0.0
        %567 = vmatpush2.msra.mxu0 0.0
        %568 = vmatprep.subr.mxu0 0.0
        %569 = vmatpush2.msra.mxu0 0.0
        %570 = vmatprep.subr.mxu0 0.0
        %571 = vmatpush2.msra.mxu0 0.0
        %572 = vmatprep.subr.mxu0 0.0
        %573 = vmatpush2.msra.mxu0 0.0
        %574 = vmatprep.mubr.f32.mxu0 0.0
        %575 = vmatmul.mubr.f32.gmra.mxu0 %v487
        %v576 = vpop.f32.mrf.mxu0
        %v577 = vadd.f32 %v509, %v576
        %v578 = vpop.f32.mrf.mxu0
        %579 = vdwg.mxu0
        %v580 = vmax.f32 %v577, 0.0
        %s581 = scalar_lea.vmem [#allocation2], 272
        %v582 = vld [vmem:[%s581] sm:$0xff]
        %v583 = vld [vmem:[%s581 + $0x8] sm:$0xff]
        %v584 = vld [vmem:[%s581 + $0x10] sm:$0xff]
        %v585 = vld [vmem:[%s581 + $0x18] sm:$0xff]
        %v586 = vld [vmem:[%s581 + $0x20] sm:$0xff]
        %v587 = vld [vmem:[%s581 + $0x28] sm:$0xff]
        %v588 = vld [vmem:[%s581 + $0x30] sm:$0xff]
        %v589 = vld [vmem:[%s581 + $0x38] sm:$0xff]
        %v590 = vld [vmem:[%s581 + $0x40] sm:$0xff]
        %v591 = vld [vmem:[%s581 + $0x48] sm:$0xff]
        %v592 = vld [vmem:[%s581 + $0x50] sm:$0xff]
        %v593 = vld [vmem:[%s581 + $0x58] sm:$0xff]
        %v594 = vld [vmem:[%s581 + $0x60] sm:$0xff]
        %v595 = vld [vmem:[%s581 + $0x68] sm:$0xff]
        %v596 = vld [vmem:[%s581 + $0x70] sm:$0xff]
        %v597 = vld [vmem:[%s581 + $0x78] sm:$0xff]
        %v598 = vld [vmem:[%s581 + $0x80] sm:$0x1]
        %v599 = vlaneseq
        %v600 = vshrl.u32 %v599, 7
        %v601 = vsub.s32 0, %v600
        %v602 = vrot.slane %v598, %v601
        %603 = vmatprep.subr.mxu0 0.0
        %604 = vmatpush1.msra.mxu0 %v597
        %605 = vmatprep.subr.mxu0 0.0
        %606 = vmatpush1.msra.mxu0 %v596
        %607 = vmatprep.subr.mxu0 0.0
        %608 = vmatpush1.msra.mxu0 %v595
        %609 = vmatprep.subr.mxu0 0.0
        %610 = vmatpush1.msra.mxu0 %v594
        %611 = vmatprep.subr.mxu0 0.0
        %612 = vmatpush1.msra.mxu0 %v593
        %613 = vmatprep.subr.mxu0 0.0
        %614 = vmatpush1.msra.mxu0 %v592
        %615 = vmatprep.subr.mxu0 0.0
        %616 = vmatpush1.msra.mxu0 %v591
        %617 = vmatprep.subr.mxu0 0.0
        %618 = vmatpush1.msra.mxu0 %v590
        %619 = vmatprep.subr.mxu0 0.0
        %620 = vmatpush1.msra.mxu0 %v589
        %621 = vmatprep.subr.mxu0 0.0
        %622 = vmatpush1.msra.mxu0 %v588
        %623 = vmatprep.subr.mxu0 0.0
        %624 = vmatpush1.msra.mxu0 %v587
        %625 = vmatprep.subr.mxu0 0.0
        %626 = vmatpush1.msra.mxu0 %v586
        %627 = vmatprep.subr.mxu0 0.0
        %628 = vmatpush1.msra.mxu0 %v585
        %629 = vmatprep.subr.mxu0 0.0
        %630 = vmatpush1.msra.mxu0 %v584
        %631 = vmatprep.subr.mxu0 0.0
        %632 = vmatpush1.msra.mxu0 %v583
        %633 = vmatprep.subr.mxu0 0.0
        %634 = vmatpush1.msra.mxu0 %v582
        %635 = vmatprep.subr.mxu0 0.0
        %636 = vmatpush2.msra.mxu0 0.0
        %637 = vmatprep.subr.mxu0 0.0
        %638 = vmatpush2.msra.mxu0 0.0
        %639 = vmatprep.subr.mxu0 0.0
        %640 = vmatpush2.msra.mxu0 0.0
        %641 = vmatprep.subr.mxu0 0.0
        %642 = vmatpush2.msra.mxu0 0.0
        %643 = vmatprep.subr.mxu0 0.0
        %644 = vmatpush2.msra.mxu0 0.0
        %645 = vmatprep.subr.mxu0 0.0
        %646 = vmatpush2.msra.mxu0 0.0
        %647 = vmatprep.subr.mxu0 0.0
        %648 = vmatpush2.msra.mxu0 0.0
        %649 = vmatprep.subr.mxu0 0.0
        %650 = vmatpush2.msra.mxu0 0.0
        %651 = vmatprep.subr.mxu0 0.0
        %652 = vmatpush2.msra.mxu0 0.0
        %653 = vmatprep.subr.mxu0 0.0
        %654 = vmatpush2.msra.mxu0 0.0
        %655 = vmatprep.subr.mxu0 0.0
        %656 = vmatpush2.msra.mxu0 0.0
        %657 = vmatprep.subr.mxu0 0.0
        %658 = vmatpush2.msra.mxu0 0.0
        %659 = vmatprep.subr.mxu0 0.0
        %660 = vmatpush2.msra.mxu0 0.0
        %661 = vmatprep.subr.mxu0 0.0
        %662 = vmatpush2.msra.mxu0 0.0
        %663 = vmatprep.subr.mxu0 0.0
        %664 = vmatpush2.msra.mxu0 0.0
        %665 = vmatprep.subr.mxu0 0.0
        %666 = vmatpush2.msra.mxu0 0.0
        %667 = vmatprep.mubr.f32.mxu0 0.0
        %668 = vmatmul.mubr.f32.gmra.mxu0 %v580
        %v669 = vpop.f32.mrf.mxu0
        %v670 = vadd.f32 %v602, %v669
        %v671 = vpop.f32.mrf.mxu0
        %672 = vdwg.mxu0
        %v673 = vmax.f32 %v670, 0.0
        %s674 = scalar_lea.vmem [#allocation2], 408
        %v675 = vld [vmem:[%s674] sm:$0xff]
        %v676 = vld [vmem:[%s674 + $0x8] sm:$0xff]
        %v677 = vld [vmem:[%s674 + $0x10] sm:$0xff]
        %v678 = vld [vmem:[%s674 + $0x18] sm:$0xff]
        %v679 = vld [vmem:[%s674 + $0x20] sm:$0xff]
        %v680 = vld [vmem:[%s674 + $0x28] sm:$0xff]
        %v681 = vld [vmem:[%s674 + $0x30] sm:$0xff]
        %v682 = vld [vmem:[%s674 + $0x38] sm:$0xff]
        %v683 = vld [vmem:[%s674 + $0x40] sm:$0xff]
        %v684 = vld [vmem:[%s674 + $0x48] sm:$0xff]
        %v685 = vld [vmem:[%s674 + $0x50] sm:$0xff]
        %v686 = vld [vmem:[%s674 + $0x58] sm:$0xff]
        %v687 = vld [vmem:[%s674 + $0x60] sm:$0xff]
        %v688 = vld [vmem:[%s674 + $0x68] sm:$0xff]
        %v689 = vld [vmem:[%s674 + $0x70] sm:$0xff]
        %v690 = vld [vmem:[%s674 + $0x78] sm:$0xff]
        %v691 = vld [vmem:[%s674 + $0x80] sm:$0x1]
        %v692 = vlaneseq
        %v693 = vshrl.u32 %v692, 7
        %v694 = vsub.s32 0, %v693
        %v695 = vrot.slane %v691, %v694
        %696 = vmatprep.subr.mxu0 0.0
        %697 = vmatpush1.msra.mxu0 %v690
        %698 = vmatprep.subr.mxu0 0.0
        %699 = vmatpush1.msra.mxu0 %v689
        %700 = vmatprep.subr.mxu0 0.0
        %701 = vmatpush1.msra.mxu0 %v688
        %702 = vmatprep.subr.mxu0 0.0
        %703 = vmatpush1.msra.mxu0 %v687
        %704 = vmatprep.subr.mxu0 0.0
        %705 = vmatpush1.msra.mxu0 %v686
        %706 = vmatprep.subr.mxu0 0.0
        %707 = vmatpush1.msra.mxu0 %v685
        %708 = vmatprep.subr.mxu0 0.0
        %709 = vmatpush1.msra.mxu0 %v684
        %710 = vmatprep.subr.mxu0 0.0
        %711 = vmatpush1.msra.mxu0 %v683
        %712 = vmatprep.subr.mxu0 0.0
        %713 = vmatpush1.msra.mxu0 %v682
        %714 = vmatprep.subr.mxu0 0.0
        %715 = vmatpush1.msra.mxu0 %v681
        %716 = vmatprep.subr.mxu0 0.0
        %717 = vmatpush1.msra.mxu0 %v680
        %718 = vmatprep.subr.mxu0 0.0
        %719 = vmatpush1.msra.mxu0 %v679
        %720 = vmatprep.subr.mxu0 0.0
        %721 = vmatpush1.msra.mxu0 %v678
        %722 = vmatprep.subr.mxu0 0.0
        %723 = vmatpush1.msra.mxu0 %v677
        %724 = vmatprep.subr.mxu0 0.0
        %725 = vmatpush1.msra.mxu0 %v676
        %726 = vmatprep.subr.mxu0 0.0
        %727 = vmatpush1.msra.mxu0 %v675
        %728 = vmatprep.subr.mxu0 0.0
        %729 = vmatpush2.msra.mxu0 0.0
        %730 = vmatprep.subr.mxu0 0.0
        %731 = vmatpush2.msra.mxu0 0.0
        %732 = vmatprep.subr.mxu0 0.0
        %733 = vmatpush2.msra.mxu0 0.0
        %734 = vmatprep.subr.mxu0 0.0
        %735 = vmatpush2.msra.mxu0 0.0
        %736 = vmatprep.subr.mxu0 0.0
        %737 = vmatpush2.msra.mxu0 0.0
        %738 = vmatprep.subr.mxu0 0.0
        %739 = vmatpush2.msra.mxu0 0.0
        %740 = vmatprep.subr.mxu0 0.0
        %741 = vmatpush2.msra.mxu0 0.0
        %742 = vmatprep.subr.mxu0 0.0
        %743 = vmatpush2.msra.mxu0 0.0
        %744 = vmatprep.subr.mxu0 0.0
        %745 = vmatpush2.msra.mxu0 0.0
        %746 = vmatprep.subr.mxu0 0.0
        %747 = vmatpush2.msra.mxu0 0.0
        %748 = vmatprep.subr.mxu0 0.0
        %749 = vmatpush2.msra.mxu0 0.0
        %750 = vmatprep.subr.mxu0 0.0
        %751 = vmatpush2.msra.mxu0 0.0
        %752 = vmatprep.subr.mxu0 0.0
        %753 = vmatpush2.msra.mxu0 0.0
        %754 = vmatprep.subr.mxu0 0.0
        %755 = vmatpush2.msra.mxu0 0.0
        %756 = vmatprep.subr.mxu0 0.0
        %757 = vmatpush2.msra.mxu0 0.0
        %758 = vmatprep.subr.mxu0 0.0
        %759 = vmatpush2.msra.mxu0 0.0
        %760 = vmatprep.mubr.f32.mxu0 0.0
        %761 = vmatmul.mubr.f32.gmra.mxu0 %v673
        %v762 = vpop.f32.mrf.mxu0
        %v763 = vadd.f32 %v695, %v762
        %v764 = vpop.f32.mrf.mxu0
        %765 = vdwg.mxu0
        %v766 = vmax.f32 %v763, 0.0
        %s767 = scalar_lea.vmem [#allocation2], 544
        %v768 = vld [vmem:[%s767] sm:$0xff]
        %v769 = vld [vmem:[%s767 + $0x8] sm:$0xff]
        %v770 = vld [vmem:[%s767 + $0x10] sm:$0xff]
        %v771 = vld [vmem:[%s767 + $0x18] sm:$0xff]
        %v772 = vld [vmem:[%s767 + $0x20] sm:$0xff]
        %v773 = vld [vmem:[%s767 + $0x28] sm:$0xff]
        %v774 = vld [vmem:[%s767 + $0x30] sm:$0xff]
        %v775 = vld [vmem:[%s767 + $0x38] sm:$0xff]
        %v776 = vld [vmem:[%s767 + $0x40] sm:$0xff]
        %v777 = vld [vmem:[%s767 + $0x48] sm:$0xff]
        %v778 = vld [vmem:[%s767 + $0x50] sm:$0xff]
        %v779 = vld [vmem:[%s767 + $0x58] sm:$0xff]
        %v780 = vld [vmem:[%s767 + $0x60] sm:$0xff]
        %v781 = vld [vmem:[%s767 + $0x68] sm:$0xff]
        %v782 = vld [vmem:[%s767 + $0x70] sm:$0xff]
        %v783 = vld [vmem:[%s767 + $0x78] sm:$0xff]
        %v784 = vld [vmem:[%s767 + $0x80] sm:$0x1]
        %v785 = vlaneseq
        %v786 = vshrl.u32 %v785, 7
        %v787 = vsub.s32 0, %v786
        %v788 = vrot.slane %v784, %v787
        %789 = vmatprep.subr.mxu0 0.0
        %790 = vmatpush1.msra.mxu0 %v783
        %791 = vmatprep.subr.mxu0 0.0
        %792 = vmatpush1.msra.mxu0 %v782
        %793 = vmatprep.subr.mxu0 0.0
        %794 = vmatpush1.msra.mxu0 %v781
        %795 = vmatprep.subr.mxu0 0.0
        %796 = vmatpush1.msra.mxu0 %v780
        %797 = vmatprep.subr.mxu0 0.0
        %798 = vmatpush1.msra.mxu0 %v779
        %799 = vmatprep.subr.mxu0 0.0
        %800 = vmatpush1.msra.mxu0 %v778
        %801 = vmatprep.subr.mxu0 0.0
        %802 = vmatpush1.msra.mxu0 %v777
        %803 = vmatprep.subr.mxu0 0.0
        %804 = vmatpush1.msra.mxu0 %v776
        %805 = vmatprep.subr.mxu0 0.0
        %806 = vmatpush1.msra.mxu0 %v775
        %807 = vmatprep.subr.mxu0 0.0
        %808 = vmatpush1.msra.mxu0 %v774
        %809 = vmatprep.subr.mxu0 0.0
        %810 = vmatpush1.msra.mxu0 %v773
        %811 = vmatprep.subr.mxu0 0.0
        %812 = vmatpush1.msra.mxu0 %v772
        %813 = vmatprep.subr.mxu0 0.0
        %814 = vmatpush1.msra.mxu0 %v771
        %815 = vmatprep.subr.mxu0 0.0
        %816 = vmatpush1.msra.mxu0 %v770
        %817 = vmatprep.subr.mxu0 0.0
        %818 = vmatpush1.msra.mxu0 %v769
        %819 = vmatprep.subr.mxu0 0.0
        %820 = vmatpush1.msra.mxu0 %v768
        %821 = vmatprep.subr.mxu0 0.0
        %822 = vmatpush2.msra.mxu0 0.0
        %823 = vmatprep.subr.mxu0 0.0
        %824 = vmatpush2.msra.mxu0 0.0
        %825 = vmatprep.subr.mxu0 0.0
        %826 = vmatpush2.msra.mxu0 0.0
        %827 = vmatprep.subr.mxu0 0.0
        %828 = vmatpush2.msra.mxu0 0.0
        %829 = vmatprep.subr.mxu0 0.0
        %830 = vmatpush2.msra.mxu0 0.0
        %831 = vmatprep.subr.mxu0 0.0
        %832 = vmatpush2.msra.mxu0 0.0
        %833 = vmatprep.subr.mxu0 0.0
        %834 = vmatpush2.msra.mxu0 0.0
        %835 = vmatprep.subr.mxu0 0.0
        %836 = vmatpush2.msra.mxu0 0.0
        %837 = vmatprep.subr.mxu0 0.0
        %838 = vmatpush2.msra.mxu0 0.0
        %839 = vmatprep.subr.mxu0 0.0
        %840 = vmatpush2.msra.mxu0 0.0
        %841 = vmatprep.subr.mxu0 0.0
        %842 = vmatpush2.msra.mxu0 0.0
        %843 = vmatprep.subr.mxu0 0.0
        %844 = vmatpush2.msra.mxu0 0.0
        %845 = vmatprep.subr.mxu0 0.0
        %846 = vmatpush2.msra.mxu0 0.0
        %847 = vmatprep.subr.mxu0 0.0
        %848 = vmatpush2.msra.mxu0 0.0
        %849 = vmatprep.subr.mxu0 0.0
        %850 = vmatpush2.msra.mxu0 0.0
        %851 = vmatprep.subr.mxu0 0.0
        %852 = vmatpush2.msra.mxu0 0.0
        %853 = vmatprep.mubr.f32.mxu0 0.0
        %854 = vmatmul.mubr.f32.gmra.mxu0 %v766
        %v855 = vpop.f32.mrf.mxu0
        %v856 = vadd.f32 %v788, %v855
        %v857 = vpop.f32.mrf.mxu0
        %858 = vdwg.mxu0
        %v859 = vlaneseq
        %v860 = vshrl.u32 %v859, 7
        %v861 = vsub.s32 0, %v860
        %v862 = vrot.slane %v307, %v861
        %863 = vmatprep.subr.mxu0 0.0
        %864 = vmatpush1.msra.mxu0 %v306
        %865 = vmatprep.subr.mxu0 0.0
        %866 = vmatpush1.msra.mxu0 %v305
        %867 = vmatprep.subr.mxu0 0.0
        %868 = vmatpush1.msra.mxu0 %v304
        %869 = vmatprep.subr.mxu0 0.0
        %870 = vmatpush1.msra.mxu0 %v303
        %871 = vmatprep.subr.mxu0 0.0
        %872 = vmatpush1.msra.mxu0 %v302
        %873 = vmatprep.subr.mxu0 0.0
        %874 = vmatpush1.msra.mxu0 %v301
        %875 = vmatprep.subr.mxu0 0.0
        %876 = vmatpush1.msra.mxu0 %v300
        %877 = vmatprep.subr.mxu0 0.0
        %878 = vmatpush1.msra.mxu0 %v299
        %879 = vmatprep.subr.mxu0 0.0
        %880 = vmatpush1.msra.mxu0 %v298
        %881 = vmatprep.subr.mxu0 0.0
        %882 = vmatpush1.msra.mxu0 %v297
        %883 = vmatprep.subr.mxu0 0.0
        %884 = vmatpush1.msra.mxu0 %v296
        %885 = vmatprep.subr.mxu0 0.0
        %886 = vmatpush1.msra.mxu0 %v295
        %887 = vmatprep.subr.mxu0 0.0
        %888 = vmatpush1.msra.mxu0 %v294
        %889 = vmatprep.subr.mxu0 0.0
        %890 = vmatpush1.msra.mxu0 %v293
        %891 = vmatprep.subr.mxu0 0.0
        %892 = vmatpush1.msra.mxu0 %v292
        %893 = vmatprep.subr.mxu0 0.0
        %894 = vmatpush1.msra.mxu0 %v291
        %895 = vmatprep.subr.mxu0 0.0
        %896 = vmatpush2.msra.mxu0 0.0
        %897 = vmatprep.subr.mxu0 0.0
        %898 = vmatpush2.msra.mxu0 0.0
        %899 = vmatprep.subr.mxu0 0.0
        %900 = vmatpush2.msra.mxu0 0.0
        %901 = vmatprep.subr.mxu0 0.0
        %902 = vmatpush2.msra.mxu0 0.0
        %903 = vmatprep.subr.mxu0 0.0
        %904 = vmatpush2.msra.mxu0 0.0
        %905 = vmatprep.subr.mxu0 0.0
        %906 = vmatpush2.msra.mxu0 0.0
        %907 = vmatprep.subr.mxu0 0.0
        %908 = vmatpush2.msra.mxu0 0.0
        %909 = vmatprep.subr.mxu0 0.0
        %910 = vmatpush2.msra.mxu0 0.0
        %911 = vmatprep.subr.mxu0 0.0
        %912 = vmatpush2.msra.mxu0 0.0
        %913 = vmatprep.subr.mxu0 0.0
        %914 = vmatpush2.msra.mxu0 0.0
        %915 = vmatprep.subr.mxu0 0.0
        %916 = vmatpush2.msra.mxu0 0.0
        %917 = vmatprep.subr.mxu0 0.0
        %918 = vmatpush2.msra.mxu0 0.0
        %919 = vmatprep.subr.mxu0 0.0
        %920 = vmatpush2.msra.mxu0 0.0
        %921 = vmatprep.subr.mxu0 0.0
        %922 = vmatpush2.msra.mxu0 0.0
        %923 = vmatprep.subr.mxu0 0.0
        %924 = vmatpush2.msra.mxu0 0.0
        %925 = vmatprep.subr.mxu0 0.0
        %926 = vmatpush2.msra.mxu0 0.0
        %927 = vmatprep.mubr.f32.mxu0 0.0
        %928 = vmatmul.mubr.f32.gmra.mxu0 %v856
        %v929 = vpop.f32.mrf.mxu0
        %v930 = vadd.f32 %v862, %v929
        %v931 = vpop.f32.mrf.mxu0
        %932 = vdwg.mxu0
        %v933 = vlaneseq
        %v934 = vshrl.u32 %v933, 7
        %v935 = vsub.s32 0, %v934
        %v936 = vrot.slane %v310, %v935
        %vm937 = vcmask 130048
        %v939 = vsel %vm937, %v930, 0
        %941 = vmatprep.subr.mxu0 0.0
        %942 = vmatpush1.msra.mxu0 0.0
        %943 = vmatprep.subr.mxu0 0.0
        %944 = vmatpush1.msra.mxu0 0.0
        %945 = vmatprep.subr.mxu0 0.0
        %946 = vmatpush1.msra.mxu0 0.0
        %947 = vmatprep.subr.mxu0 0.0
        %948 = vmatpush1.msra.mxu0 0.0
        %949 = vmatprep.subr.mxu0 0.0
        %950 = vmatpush1.msra.mxu0 0.0
        %951 = vmatprep.subr.mxu0 0.0
        %952 = vmatpush1.msra.mxu0 0.0
        %953 = vmatprep.subr.mxu0 0.0
        %954 = vmatpush1.msra.mxu0 0.0
        %955 = vmatprep.subr.mxu0 0.0
        %956 = vmatpush1.msra.mxu0 0.0
        %957 = vmatprep.subr.mxu0 0.0
        %958 = vmatpush1.msra.mxu0 0.0
        %959 = vmatprep.subr.mxu0 0.0
        %960 = vmatpush1.msra.mxu0 0.0
        %961 = vmatprep.subr.mxu0 0.0
        %962 = vmatpush1.msra.mxu0 0.0
        %963 = vmatprep.subr.mxu0 0.0
        %964 = vmatpush1.msra.mxu0 0.0
        %965 = vmatprep.subr.mxu0 0.0
        %966 = vmatpush1.msra.mxu0 0.0
        %967 = vmatprep.subr.mxu0 0.0
        %968 = vmatpush1.msra.mxu0 0.0
        %969 = vmatprep.subr.mxu0 0.0
        %970 = vmatpush1.msra.mxu0 %v309
        %971 = vmatprep.subr.mxu0 0.0
        %972 = vmatpush1.msra.mxu0 %v308
        %973 = vmatprep.subr.mxu0 0.0
        %974 = vmatpush2.msra.mxu0 0.0
        %975 = vmatprep.subr.mxu0 0.0
        %976 = vmatpush2.msra.mxu0 0.0
        %977 = vmatprep.subr.mxu0 0.0
        %978 = vmatpush2.msra.mxu0 0.0
        %979 = vmatprep.subr.mxu0 0.0
        %980 = vmatpush2.msra.mxu0 0.0
        %981 = vmatprep.subr.mxu0 0.0
        %982 = vmatpush2.msra.mxu0 0.0
        %983 = vmatprep.subr.mxu0 0.0
        %984 = vmatpush2.msra.mxu0 0.0
        %985 = vmatprep.subr.mxu0 0.0
        %986 = vmatpush2.msra.mxu0 0.0
        %987 = vmatprep.subr.mxu0 0.0
        %988 = vmatpush2.msra.mxu0 0.0
        %989 = vmatprep.subr.mxu0 0.0
        %990 = vmatpush2.msra.mxu0 0.0
        %991 = vmatprep.subr.mxu0 0.0
        %992 = vmatpush2.msra.mxu0 0.0
        %993 = vmatprep.subr.mxu0 0.0
        %994 = vmatpush2.msra.mxu0 0.0
        %995 = vmatprep.subr.mxu0 0.0
        %996 = vmatpush2.msra.mxu0 0.0
        %997 = vmatprep.subr.mxu0 0.0
        %998 = vmatpush2.msra.mxu0 0.0
        %999 = vmatprep.subr.mxu0 0.0
        %1000 = vmatpush2.msra.mxu0 0.0
        %1001 = vmatprep.subr.mxu0 0.0
        %1002 = vmatpush2.msra.mxu0 0.0
        %1003 = vmatprep.subr.mxu0 0.0
        %1004 = vmatpush2.msra.mxu0 0.0
        %1005 = vmatprep.mubr.f32.mxu0 0.0
        %1006 = vmatmul.mubr.f32.gmra.mxu0 %v939
        %v1007 = vpop.f32.mrf.mxu0
        %v1008 = vadd.f32 %v936, %v1007
        %v1009 = vpop.f32.mrf.mxu0
        %1010 = vdwg.mxu0
        %v1011 = vmax.f32 %v1008, 0.0
        %v1012 = vld [vmem:[%s5] sm:$0xff]
        %v1013 = vld [vmem:[%s5 + $0x8] sm:$0xff]
        %v1014 = vld [vmem:[%s5 + $0x10] sm:$0xff]
        %v1015 = vld [vmem:[%s5 + $0x18] sm:$0xff]
        %v1016 = vld [vmem:[%s5 + $0x20] sm:$0x1]
        %v1017 = vlaneseq
        %v1018 = vshrl.u32 %v1017, 7
        %v1019 = vsub.s32 0, %v1018
        %v1020 = vrot.slane %v1016, %v1019
        %vm1021 = vcmask 261120
        %v1023 = vsel %vm1021, %v1011, 0
        %1025 = vmatprep.subr.mxu0 0.0
        %1026 = vmatpush1.msra.mxu0 0.0
        %1027 = vmatprep.subr.mxu0 0.0
        %1028 = vmatpush1.msra.mxu0 0.0
        %1029 = vmatprep.subr.mxu0 0.0
        %1030 = vmatpush1.msra.mxu0 0.0
        %1031 = vmatprep.subr.mxu0 0.0
        %1032 = vmatpush1.msra.mxu0 0.0
        %1033 = vmatprep.subr.mxu0 0.0
        %1034 = vmatpush1.msra.mxu0 0.0
        %1035 = vmatprep.subr.mxu0 0.0
        %1036 = vmatpush1.msra.mxu0 0.0
        %1037 = vmatprep.subr.mxu0 0.0
        %1038 = vmatpush1.msra.mxu0 0.0
        %1039 = vmatprep.subr.mxu0 0.0
        %1040 = vmatpush1.msra.mxu0 0.0
        %1041 = vmatprep.subr.mxu0 0.0
        %1042 = vmatpush1.msra.mxu0 0.0
        %1043 = vmatprep.subr.mxu0 0.0
        %1044 = vmatpush1.msra.mxu0 0.0
        %1045 = vmatprep.subr.mxu0 0.0
        %1046 = vmatpush1.msra.mxu0 0.0
        %1047 = vmatprep.subr.mxu0 0.0
        %1048 = vmatpush1.msra.mxu0 0.0
        %1049 = vmatprep.subr.mxu0 0.0
        %1050 = vmatpush1.msra.mxu0 %v1015
        %1051 = vmatprep.subr.mxu0 0.0
        %1052 = vmatpush1.msra.mxu0 %v1014
        %1053 = vmatprep.subr.mxu0 0.0
        %1054 = vmatpush1.msra.mxu0 %v1013
        %1055 = vmatprep.subr.mxu0 0.0
        %1056 = vmatpush1.msra.mxu0 %v1012
        %1057 = vmatprep.subr.mxu0 0.0
        %1058 = vmatpush2.msra.mxu0 0.0
        %1059 = vmatprep.subr.mxu0 0.0
        %1060 = vmatpush2.msra.mxu0 0.0
        %1061 = vmatprep.subr.mxu0 0.0
        %1062 = vmatpush2.msra.mxu0 0.0
        %1063 = vmatprep.subr.mxu0 0.0
        %1064 = vmatpush2.msra.mxu0 0.0
        %1065 = vmatprep.subr.mxu0 0.0
        %1066 = vmatpush2.msra.mxu0 0.0
        %1067 = vmatprep.subr.mxu0 0.0
        %1068 = vmatpush2.msra.mxu0 0.0
        %1069 = vmatprep.subr.mxu0 0.0
        %1070 = vmatpush2.msra.mxu0 0.0
        %1071 = vmatprep.subr.mxu0 0.0
        %1072 = vmatpush2.msra.mxu0 0.0
        %1073 = vmatprep.subr.mxu0 0.0
        %1074 = vmatpush2.msra.mxu0 0.0
        %1075 = vmatprep.subr.mxu0 0.0
        %1076 = vmatpush2.msra.mxu0 0.0
        %1077 = vmatprep.subr.mxu0 0.0
        %1078 = vmatpush2.msra.mxu0 0.0
        %1079 = vmatprep.subr.mxu0 0.0
        %1080 = vmatpush2.msra.mxu0 0.0
        %1081 = vmatprep.subr.mxu0 0.0
        %1082 = vmatpush2.msra.mxu0 0.0
        %1083 = vmatprep.subr.mxu0 0.0
        %1084 = vmatpush2.msra.mxu0 0.0
        %1085 = vmatprep.subr.mxu0 0.0
        %1086 = vmatpush2.msra.mxu0 0.0
        %1087 = vmatprep.subr.mxu0 0.0
        %1088 = vmatpush2.msra.mxu0 0.0
        %1089 = vmatprep.mubr.f32.mxu0 0.0
        %1090 = vmatmul.mubr.f32.gmra.mxu0 %v1023
        %v1091 = vpop.f32.mrf.mxu0
        %v1092 = vadd.f32 %v1020, %v1091
        %v1093 = vpop.f32.mrf.mxu0
        %1094 = vdwg.mxu0
        %v1095 = vmax.f32 %v1092, 0.0
        %s1096 = scalar_lea.vmem %s5, 40
        %v1097 = vld [vmem:[%s1096] sm:$0xff]
        %v1098 = vld [vmem:[%s1096 + $0x8] sm:$0xff]
        %v1099 = vld [vmem:[%s1096 + $0x10] sm:$0xff]
        %v1100 = vld [vmem:[%s1096 + $0x18] sm:$0xff]
        %v1101 = vld [vmem:[%s1096 + $0x20] sm:$0x1]
        %v1102 = vlaneseq
        %v1103 = vshrl.u32 %v1102, 7
        %v1104 = vsub.s32 0, %v1103
        %v1105 = vrot.slane %v1101, %v1104
        %v1107 = vsel %vm1021, %v1095, 0
        %1109 = vmatprep.subr.mxu0 0.0
        %1110 = vmatpush1.msra.mxu0 0.0
        %1111 = vmatprep.subr.mxu0 0.0
        %1112 = vmatpush1.msra.mxu0 0.0
        %1113 = vmatprep.subr.mxu0 0.0
        %1114 = vmatpush1.msra.mxu0 0.0
        %1115 = vmatprep.subr.mxu0 0.0
        %1116 = vmatpush1.msra.mxu0 0.0
        %1117 = vmatprep.subr.mxu0 0.0
        %1118 = vmatpush1.msra.mxu0 0.0
        %1119 = vmatprep.subr.mxu0 0.0
        %1120 = vmatpush1.msra.mxu0 0.0
        %1121 = vmatprep.subr.mxu0 0.0
        %1122 = vmatpush1.msra.mxu0 0.0
        %1123 = vmatprep.subr.mxu0 0.0
        %1124 = vmatpush1.msra.mxu0 0.0
        %1125 = vmatprep.subr.mxu0 0.0
        %1126 = vmatpush1.msra.mxu0 0.0
        %1127 = vmatprep.subr.mxu0 0.0
        %1128 = vmatpush1.msra.mxu0 0.0
        %1129 = vmatprep.subr.mxu0 0.0
        %1130 = vmatpush1.msra.mxu0 0.0
        %1131 = vmatprep.subr.mxu0 0.0
        %1132 = vmatpush1.msra.mxu0 0.0
        %1133 = vmatprep.subr.mxu0 0.0
        %1134 = vmatpush1.msra.mxu0 %v1100
        %1135 = vmatprep.subr.mxu0 0.0
        %1136 = vmatpush1.msra.mxu0 %v1099
        %1137 = vmatprep.subr.mxu0 0.0
        %1138 = vmatpush1.msra.mxu0 %v1098
        %1139 = vmatprep.subr.mxu0 0.0
        %1140 = vmatpush1.msra.mxu0 %v1097
        %1141 = vmatprep.subr.mxu0 0.0
        %1142 = vmatpush2.msra.mxu0 0.0
        %1143 = vmatprep.subr.mxu0 0.0
        %1144 = vmatpush2.msra.mxu0 0.0
        %1145 = vmatprep.subr.mxu0 0.0
        %1146 = vmatpush2.msra.mxu0 0.0
        %1147 = vmatprep.subr.mxu0 0.0
        %1148 = vmatpush2.msra.mxu0 0.0
        %1149 = vmatprep.subr.mxu0 0.0
        %1150 = vmatpush2.msra.mxu0 0.0
        %1151 = vmatprep.subr.mxu0 0.0
        %1152 = vmatpush2.msra.mxu0 0.0
        %1153 = vmatprep.subr.mxu0 0.0
        %1154 = vmatpush2.msra.mxu0 0.0
        %1155 = vmatprep.subr.mxu0 0.0
        %1156 = vmatpush2.msra.mxu0 0.0
        %1157 = vmatprep.subr.mxu0 0.0
        %1158 = vmatpush2.msra.mxu0 0.0
        %1159 = vmatprep.subr.mxu0 0.0
        %1160 = vmatpush2.msra.mxu0 0.0
        %1161 = vmatprep.subr.mxu0 0.0
        %1162 = vmatpush2.msra.mxu0 0.0
        %1163 = vmatprep.subr.mxu0 0.0
        %1164 = vmatpush2.msra.mxu0 0.0
        %1165 = vmatprep.subr.mxu0 0.0
        %1166 = vmatpush2.msra.mxu0 0.0
        %1167 = vmatprep.subr.mxu0 0.0
        %1168 = vmatpush2.msra.mxu0 0.0
        %1169 = vmatprep.subr.mxu0 0.0
        %1170 = vmatpush2.msra.mxu0 0.0
        %1171 = vmatprep.subr.mxu0 0.0
        %1172 = vmatpush2.msra.mxu0 0.0
        %1173 = vmatprep.mubr.f32.mxu0 0.0
        %1174 = vmatmul.mubr.f32.gmra.mxu0 %v1107
        %v1175 = vpop.f32.mrf.mxu0
        %v1176 = vadd.f32 %v1105, %v1175
        %v1177 = vpop.f32.mrf.mxu0
        %1178 = vdwg.mxu0
        %v1179 = vmax.f32 %v1176, 0.0
        %s1180 = scalar_lea.vmem %s5, 80
        %v1181 = vld [vmem:[%s1180] sm:$0xff]
        %v1182 = vld [vmem:[%s1180 + $0x8] sm:$0xff]
        %v1183 = vld [vmem:[%s1180 + $0x10] sm:$0xff]
        %v1184 = vld [vmem:[%s1180 + $0x18] sm:$0xff]
        %v1185 = vld [vmem:[%s1180 + $0x20] sm:$0x1]
        %v1186 = vlaneseq
        %v1187 = vshrl.u32 %v1186, 7
        %v1188 = vsub.s32 0, %v1187
        %v1189 = vrot.slane %v1185, %v1188
        %v1191 = vsel %vm1021, %v1179, 0
        %1193 = vmatprep.subr.mxu0 0.0
        %1194 = vmatpush1.msra.mxu0 0.0
        %1195 = vmatprep.subr.mxu0 0.0
        %1196 = vmatpush1.msra.mxu0 0.0
        %1197 = vmatprep.subr.mxu0 0.0
        %1198 = vmatpush1.msra.mxu0 0.0
        %1199 = vmatprep.subr.mxu0 0.0
        %1200 = vmatpush1.msra.mxu0 0.0
        %1201 = vmatprep.subr.mxu0 0.0
        %1202 = vmatpush1.msra.mxu0 0.0
        %1203 = vmatprep.subr.mxu0 0.0
        %1204 = vmatpush1.msra.mxu0 0.0
        %1205 = vmatprep.subr.mxu0 0.0
        %1206 = vmatpush1.msra.mxu0 0.0
        %1207 = vmatprep.subr.mxu0 0.0
        %1208 = vmatpush1.msra.mxu0 0.0
        %1209 = vmatprep.subr.mxu0 0.0
        %1210 = vmatpush1.msra.mxu0 0.0
        %1211 = vmatprep.subr.mxu0 0.0
        %1212 = vmatpush1.msra.mxu0 0.0
        %1213 = vmatprep.subr.mxu0 0.0
        %1214 = vmatpush1.msra.mxu0 0.0
        %1215 = vmatprep.subr.mxu0 0.0
        %1216 = vmatpush1.msra.mxu0 0.0
        %1217 = vmatprep.subr.mxu0 0.0
        %1218 = vmatpush1.msra.mxu0 %v1184
        %1219 = vmatprep.subr.mxu0 0.0
        %1220 = vmatpush1.msra.mxu0 %v1183
        %1221 = vmatprep.subr.mxu0 0.0
        %1222 = vmatpush1.msra.mxu0 %v1182
        %1223 = vmatprep.subr.mxu0 0.0
        %1224 = vmatpush1.msra.mxu0 %v1181
        %1225 = vmatprep.subr.mxu0 0.0
        %1226 = vmatpush2.msra.mxu0 0.0
        %1227 = vmatprep.subr.mxu0 0.0
        %1228 = vmatpush2.msra.mxu0 0.0
        %1229 = vmatprep.subr.mxu0 0.0
        %1230 = vmatpush2.msra.mxu0 0.0
        %1231 = vmatprep.subr.mxu0 0.0
        %1232 = vmatpush2.msra.mxu0 0.0
        %1233 = vmatprep.subr.mxu0 0.0
        %1234 = vmatpush2.msra.mxu0 0.0
        %1235 = vmatprep.subr.mxu0 0.0
        %1236 = vmatpush2.msra.mxu0 0.0
        %1237 = vmatprep.subr.mxu0 0.0
        %1238 = vmatpush2.msra.mxu0 0.0
        %1239 = vmatprep.subr.mxu0 0.0
        %1240 = vmatpush2.msra.mxu0 0.0
        %1241 = vmatprep.subr.mxu0 0.0
        %1242 = vmatpush2.msra.mxu0 0.0
        %1243 = vmatprep.subr.mxu0 0.0
        %1244 = vmatpush2.msra.mxu0 0.0
        %1245 = vmatprep.subr.mxu0 0.0
        %1246 = vmatpush2.msra.mxu0 0.0
        %1247 = vmatprep.subr.mxu0 0.0
        %1248 = vmatpush2.msra.mxu0 0.0
        %1249 = vmatprep.subr.mxu0 0.0
        %1250 = vmatpush2.msra.mxu0 0.0
        %1251 = vmatprep.subr.mxu0 0.0
        %1252 = vmatpush2.msra.mxu0 0.0
        %1253 = vmatprep.subr.mxu0 0.0
        %1254 = vmatpush2.msra.mxu0 0.0
        %1255 = vmatprep.subr.mxu0 0.0
        %1256 = vmatpush2.msra.mxu0 0.0
        %1257 = vmatprep.mubr.f32.mxu0 0.0
        %1258 = vmatmul.mubr.f32.gmra.mxu0 %v1191
        %v1259 = vpop.f32.mrf.mxu0
        %v1260 = vadd.f32 %v1189, %v1259
        %v1261 = vpop.f32.mrf.mxu0
        %1262 = vdwg.mxu0
        %v1263 = vmax.f32 %v1260, 0.0
        %s1264 = scalar_lea.vmem %s5, 120
        %v1265 = vld [vmem:[%s1264] sm:$0xff]
        %v1266 = vld [vmem:[%s1264 + $0x8] sm:$0xff]
        %v1267 = vld [vmem:[%s1264 + $0x10] sm:$0xff]
        %v1268 = vld [vmem:[%s1264 + $0x18] sm:$0xff]
        %v1269 = vld [vmem:[%s1264 + $0x20] sm:$0x1]
        %v1270 = vlaneseq
        %v1271 = vshrl.u32 %v1270, 7
        %v1272 = vsub.s32 0, %v1271
        %v1273 = vrot.slane %v1269, %v1272
        %v1275 = vsel %vm1021, %v1263, 0
        %1277 = vmatprep.subr.mxu0 0.0
        %1278 = vmatpush1.msra.mxu0 0.0
        %1279 = vmatprep.subr.mxu0 0.0
        %1280 = vmatpush1.msra.mxu0 0.0
        %1281 = vmatprep.subr.mxu0 0.0
        %1282 = vmatpush1.msra.mxu0 0.0
        %1283 = vmatprep.subr.mxu0 0.0
        %1284 = vmatpush1.msra.mxu0 0.0
        %1285 = vmatprep.subr.mxu0 0.0
        %1286 = vmatpush1.msra.mxu0 0.0
        %1287 = vmatprep.subr.mxu0 0.0
        %1288 = vmatpush1.msra.mxu0 0.0
        %1289 = vmatprep.subr.mxu0 0.0
        %1290 = vmatpush1.msra.mxu0 0.0
        %1291 = vmatprep.subr.mxu0 0.0
        %1292 = vmatpush1.msra.mxu0 0.0
        %1293 = vmatprep.subr.mxu0 0.0
        %1294 = vmatpush1.msra.mxu0 0.0
        %1295 = vmatprep.subr.mxu0 0.0
        %1296 = vmatpush1.msra.mxu0 0.0
        %1297 = vmatprep.subr.mxu0 0.0
        %1298 = vmatpush1.msra.mxu0 0.0
        %1299 = vmatprep.subr.mxu0 0.0
        %1300 = vmatpush1.msra.mxu0 0.0
        %1301 = vmatprep.subr.mxu0 0.0
        %1302 = vmatpush1.msra.mxu0 %v1268
        %1303 = vmatprep.subr.mxu0 0.0
        %1304 = vmatpush1.msra.mxu0 %v1267
        %1305 = vmatprep.subr.mxu0 0.0
        %1306 = vmatpush1.msra.mxu0 %v1266
        %1307 = vmatprep.subr.mxu0 0.0
        %1308 = vmatpush1.msra.mxu0 %v1265
        %1309 = vmatprep.subr.mxu0 0.0
        %1310 = vmatpush2.msra.mxu0 0.0
        %1311 = vmatprep.subr.mxu0 0.0
        %1312 = vmatpush2.msra.mxu0 0.0
        %1313 = vmatprep.subr.mxu0 0.0
        %1314 = vmatpush2.msra.mxu0 0.0
        %1315 = vmatprep.subr.mxu0 0.0
        %1316 = vmatpush2.msra.mxu0 0.0
        %1317 = vmatprep.subr.mxu0 0.0
        %1318 = vmatpush2.msra.mxu0 0.0
        %1319 = vmatprep.subr.mxu0 0.0
        %1320 = vmatpush2.msra.mxu0 0.0
        %1321 = vmatprep.subr.mxu0 0.0
        %1322 = vmatpush2.msra.mxu0 0.0
        %1323 = vmatprep.subr.mxu0 0.0
        %1324 = vmatpush2.msra.mxu0 0.0
        %1325 = vmatprep.subr.mxu0 0.0
        %1326 = vmatpush2.msra.mxu0 0.0
        %1327 = vmatprep.subr.mxu0 0.0
        %1328 = vmatpush2.msra.mxu0 0.0
        %1329 = vmatprep.subr.mxu0 0.0
        %1330 = vmatpush2.msra.mxu0 0.0
        %1331 = vmatprep.subr.mxu0 0.0
        %1332 = vmatpush2.msra.mxu0 0.0
        %1333 = vmatprep.subr.mxu0 0.0
        %1334 = vmatpush2.msra.mxu0 0.0
        %1335 = vmatprep.subr.mxu0 0.0
        %1336 = vmatpush2.msra.mxu0 0.0
        %1337 = vmatprep.subr.mxu0 0.0
        %1338 = vmatpush2.msra.mxu0 0.0
        %1339 = vmatprep.subr.mxu0 0.0
        %1340 = vmatpush2.msra.mxu0 0.0
        %1341 = vmatprep.mubr.f32.mxu0 0.0
        %1342 = vmatmul.mubr.f32.gmra.mxu0 %v1275
        %v1343 = vpop.f32.mrf.mxu0
        %v1344 = vadd.f32 %v1273, %v1343
        %v1345 = vpop.f32.mrf.mxu0
        %1346 = vdwg.mxu0
        %v1347 = vmax.f32 %v1344, 0.0
        %s1348 = scalar_lea.vmem %s5, 160
        %v1349 = vld [vmem:[%s1348] sm:$0xff]
        %v1350 = vld [vmem:[%s1348 + $0x8] sm:$0xff]
        %v1351 = vld [vmem:[%s1348 + $0x10] sm:$0xff]
        %v1352 = vld [vmem:[%s1348 + $0x18] sm:$0xff]
        %v1353 = vld [vmem:[%s1348 + $0x20] sm:$0x1]
        %v1354 = vlaneseq
        %v1355 = vshrl.u32 %v1354, 7
        %v1356 = vsub.s32 0, %v1355
        %v1357 = vrot.slane %v1353, %v1356
        %v1359 = vsel %vm1021, %v1347, 0
        %1361 = vmatprep.subr.mxu0 0.0
        %1362 = vmatpush1.msra.mxu0 0.0
        %1363 = vmatprep.subr.mxu0 0.0
        %1364 = vmatpush1.msra.mxu0 0.0
        %1365 = vmatprep.subr.mxu0 0.0
        %1366 = vmatpush1.msra.mxu0 0.0
        %1367 = vmatprep.subr.mxu0 0.0
        %1368 = vmatpush1.msra.mxu0 0.0
        %1369 = vmatprep.subr.mxu0 0.0
        %1370 = vmatpush1.msra.mxu0 0.0
        %1371 = vmatprep.subr.mxu0 0.0
        %1372 = vmatpush1.msra.mxu0 0.0
        %1373 = vmatprep.subr.mxu0 0.0
        %1374 = vmatpush1.msra.mxu0 0.0
        %1375 = vmatprep.subr.mxu0 0.0
        %1376 = vmatpush1.msra.mxu0 0.0
        %1377 = vmatprep.subr.mxu0 0.0
        %1378 = vmatpush1.msra.mxu0 0.0
        %1379 = vmatprep.subr.mxu0 0.0
        %1380 = vmatpush1.msra.mxu0 0.0
        %1381 = vmatprep.subr.mxu0 0.0
        %1382 = vmatpush1.msra.mxu0 0.0
        %1383 = vmatprep.subr.mxu0 0.0
        %1384 = vmatpush1.msra.mxu0 0.0
        %1385 = vmatprep.subr.mxu0 0.0
        %1386 = vmatpush1.msra.mxu0 %v1352
        %1387 = vmatprep.subr.mxu0 0.0
        %1388 = vmatpush1.msra.mxu0 %v1351
        %1389 = vmatprep.subr.mxu0 0.0
        %1390 = vmatpush1.msra.mxu0 %v1350
        %1391 = vmatprep.subr.mxu0 0.0
        %1392 = vmatpush1.msra.mxu0 %v1349
        %1393 = vmatprep.subr.mxu0 0.0
        %1394 = vmatpush2.msra.mxu0 0.0
        %1395 = vmatprep.subr.mxu0 0.0
        %1396 = vmatpush2.msra.mxu0 0.0
        %1397 = vmatprep.subr.mxu0 0.0
        %1398 = vmatpush2.msra.mxu0 0.0
        %1399 = vmatprep.subr.mxu0 0.0
        %1400 = vmatpush2.msra.mxu0 0.0
        %1401 = vmatprep.subr.mxu0 0.0
        %1402 = vmatpush2.msra.mxu0 0.0
        %1403 = vmatprep.subr.mxu0 0.0
        %1404 = vmatpush2.msra.mxu0 0.0
        %1405 = vmatprep.subr.mxu0 0.0
        %1406 = vmatpush2.msra.mxu0 0.0
        %1407 = vmatprep.subr.mxu0 0.0
        %1408 = vmatpush2.msra.mxu0 0.0
        %1409 = vmatprep.subr.mxu0 0.0
        %1410 = vmatpush2.msra.mxu0 0.0
        %1411 = vmatprep.subr.mxu0 0.0
        %1412 = vmatpush2.msra.mxu0 0.0
        %1413 = vmatprep.subr.mxu0 0.0
        %1414 = vmatpush2.msra.mxu0 0.0
        %1415 = vmatprep.subr.mxu0 0.0
        %1416 = vmatpush2.msra.mxu0 0.0
        %1417 = vmatprep.subr.mxu0 0.0
        %1418 = vmatpush2.msra.mxu0 0.0
        %1419 = vmatprep.subr.mxu0 0.0
        %1420 = vmatpush2.msra.mxu0 0.0
        %1421 = vmatprep.subr.mxu0 0.0
        %1422 = vmatpush2.msra.mxu0 0.0
        %1423 = vmatprep.subr.mxu0 0.0
        %1424 = vmatpush2.msra.mxu0 0.0
        %1425 = vmatprep.mubr.f32.mxu0 0.0
        %1426 = vmatmul.mubr.f32.gmra.mxu0 %v1359
        %v1427 = vpop.f32.mrf.mxu0
        %v1428 = vadd.f32 %v1357, %v1427
        %v1429 = vpop.f32.mrf.mxu0
        %1430 = vdwg.mxu0
        %v1431 = vlaneseq
        %v1432 = vshrl.u32 %v1431, 7
        %v1433 = vsub.s32 0, %v1432
        %v1434 = vrot.slane %v315, %v1433
        %v1436 = vsel %vm1021, %v1428, 0
        %1438 = vmatprep.subr.mxu0 0.0
        %1439 = vmatpush1.msra.mxu0 0.0
        %1440 = vmatprep.subr.mxu0 0.0
        %1441 = vmatpush1.msra.mxu0 0.0
        %1442 = vmatprep.subr.mxu0 0.0
        %1443 = vmatpush1.msra.mxu0 0.0
        %1444 = vmatprep.subr.mxu0 0.0
        %1445 = vmatpush1.msra.mxu0 0.0
        %1446 = vmatprep.subr.mxu0 0.0
        %1447 = vmatpush1.msra.mxu0 0.0
        %1448 = vmatprep.subr.mxu0 0.0
        %1449 = vmatpush1.msra.mxu0 0.0
        %1450 = vmatprep.subr.mxu0 0.0
        %1451 = vmatpush1.msra.mxu0 0.0
        %1452 = vmatprep.subr.mxu0 0.0
        %1453 = vmatpush1.msra.mxu0 0.0
        %1454 = vmatprep.subr.mxu0 0.0
        %1455 = vmatpush1.msra.mxu0 0.0
        %1456 = vmatprep.subr.mxu0 0.0
        %1457 = vmatpush1.msra.mxu0 0.0
        %1458 = vmatprep.subr.mxu0 0.0
        %1459 = vmatpush1.msra.mxu0 0.0
        %1460 = vmatprep.subr.mxu0 0.0
        %1461 = vmatpush1.msra.mxu0 0.0
        %1462 = vmatprep.subr.mxu0 0.0
        %1463 = vmatpush1.msra.mxu0 %v314
        %1464 = vmatprep.subr.mxu0 0.0
        %1465 = vmatpush1.msra.mxu0 %v313
        %1466 = vmatprep.subr.mxu0 0.0
        %1467 = vmatpush1.msra.mxu0 %v312
        %1468 = vmatprep.subr.mxu0 0.0
        %1469 = vmatpush1.msra.mxu0 %v311
        %1470 = vmatprep.subr.mxu0 0.0
        %1471 = vmatpush2.msra.mxu0 0.0
        %1472 = vmatprep.subr.mxu0 0.0
        %1473 = vmatpush2.msra.mxu0 0.0
        %1474 = vmatprep.subr.mxu0 0.0
        %1475 = vmatpush2.msra.mxu0 0.0
        %1476 = vmatprep.subr.mxu0 0.0
        %1477 = vmatpush2.msra.mxu0 0.0
        %1478 = vmatprep.subr.mxu0 0.0
        %1479 = vmatpush2.msra.mxu0 0.0
        %1480 = vmatprep.subr.mxu0 0.0
        %1481 = vmatpush2.msra.mxu0 0.0
        %1482 = vmatprep.subr.mxu0 0.0
        %1483 = vmatpush2.msra.mxu0 0.0
        %1484 = vmatprep.subr.mxu0 0.0
        %1485 = vmatpush2.msra.mxu0 0.0
        %1486 = vmatprep.subr.mxu0 0.0
        %1487 = vmatpush2.msra.mxu0 0.0
        %1488 = vmatprep.subr.mxu0 0.0
        %1489 = vmatpush2.msra.mxu0 0.0
        %1490 = vmatprep.subr.mxu0 0.0
        %1491 = vmatpush2.msra.mxu0 0.0
        %1492 = vmatprep.subr.mxu0 0.0
        %1493 = vmatpush2.msra.mxu0 0.0
        %1494 = vmatprep.subr.mxu0 0.0
        %1495 = vmatpush2.msra.mxu0 0.0
        %1496 = vmatprep.subr.mxu0 0.0
        %1497 = vmatpush2.msra.mxu0 0.0
        %1498 = vmatprep.subr.mxu0 0.0
        %1499 = vmatpush2.msra.mxu0 0.0
        %1500 = vmatprep.subr.mxu0 0.0
        %1501 = vmatpush2.msra.mxu0 0.0
        %1502 = vmatprep.mubr.f32.mxu0 0.0
        %1503 = vmatmul.mubr.f32.gmra.mxu0 %v1436
        %v1504 = vpop.f32.mrf.mxu0
        %v1505 = vadd.f32 %v1434, %v1504
        %v1506 = vpop.f32.mrf.mxu0
        %1507 = vdwg.mxu0
        %1508 = vst [vmem:[%s288] sm:$0xff] %v1505
        %p1509 = scmp.lt.s32.totalorder %s19, 1
        %s1510 = scalar_select %p1509, %s19, 1
        %s1511 = smul.addr %s1510, 8
        %s1512 = scalar_lea.vmem %s7, %s1511
        // Predicated region
        $region53: #{agg_exc_forward.1} parent=47 // pred_check
          %p1513 = pneg %p189
        $region54: #{agg_exc_forward.1} parent=47 // pred_check_branch
          %1515 = sbr.rel (%p1513) target = $region56
        $region55: #{agg_exc_forward.1} parent=47 // pred_region
          _
        $region56: #{agg_exc_forward.1} parent=47 // pred_fallthru
          _
      $region48: #{agg_exc_forward.1} parent=5 // pred_fallthru
        _
      %p1516 = scmp.le.s32.totalorder 2, %s14
      // Predicated region
      $region57: #{agg_exc_forward.1} parent=5 // pred_check
        %p1517 = pneg %p1516
      $region58: #{agg_exc_forward.1} parent=5 // pred_check_branch
        %1519 = sbr.rel (%p1517) target = $region60
      $region59: #{agg_exc_forward.1} parent=5 // pred_region
        %s1520 = ssub.s32 %s14, 2
        // Predicated region
        $region61: #{agg_exc_forward.1} parent=59 // pred_check
          %p1521 = pneg %p195
        $region62: #{agg_exc_forward.1} parent=59 // pred_check_branch
          %1523 = sbr.rel (%p1521) target = $region64
        $region63: #{agg_exc_forward.1} parent=59 // pred_region
          %p1524 = scmp.lt.s32.totalorder %s20, 1
          %s1525 = scalar_select %p1524, %s20, 1
          %s1526 = smul.addr %s1525, 8
          %s1527 = scalar_lea.vmem %s7, %s1526
        $region64: #{agg_exc_forward.1} parent=59 // pred_fallthru
          _
      $region60: #{agg_exc_forward.1} parent=5 // pred_fallthru
        _
    $region6: #{agg_exc_forward.1} parent=1 // loop_footer
      %s18 = sadd.s32 1, %s14
    $region7: #{agg_exc_forward.1} parent=1 // loop_footer_branch
      %13 = sbr.rel target = $region3
    $region8: #{agg_exc_forward.1} parent=1 // loop_exit
      _
    %1528 = vsyncpa [#allocation3], 1
    %s1529 = scalar_lea.sflag [#allocation3], 1
    %1530 = vsyncpa %s1529, 1

</llo_original>
